<compile_context>
chip_gen: v5e
topology: v5e:2x2
jax: 0.10.0
libtpu: 0.0.40
codegen_flags: <defaults>
</compile_context>

<pallas_src>
import functools

import jax
import jax.numpy as jnp
from jax.experimental import pallas as pl
from jax.experimental.pallas import tpu as pltpu


def _swish(x):
    return x * jax.nn.sigmoid(x)


# ----------------------------------------------------------------------------
# Fused MBConv kernel (one grid step == `nb` images)
# ----------------------------------------------------------------------------
def _mbconv_fused_kernel(
    x_ref,                  # (nb, Cin, F)  channels on sublanes, flat HW on lanes
    w_exp_ref,              # (oup, Cin)    expand 1x1 weights, BN0 scale folded in
    bn0b_ref,               # (oup, 1)      BN0 shift
    w_dw_ref,               # (oup, k*k)    depthwise taps, BN1 scale folded in
    bn1b_ref,               # (oup, 1)      BN1 shift
    w_ser_ref,              # (oup, n_sq)   SE reduce weights
    b_ser_ref,              # (1, n_sq)
    w_see_ref,              # (oup, n_sq)   SE expand weights (transposed)
    b_see_ref,              # (oup, 1)
    w_prj_ref,              # (Cout, oup)   project 1x1 weights, BN2 scale folded in
    bn2b_ref,               # (Cout, 1)     BN2 shift
    o_ref,                  # (nb, Cout, F)
    *, H, W, k, nb, has_expand, use_skip,
):
    F = H * W
    pb = (k - 1) // 2

    # ---- weights / shifts: read once, shared across the nb images of this step ----
    w_exp = w_exp_ref[...] if has_expand else None
    bn0b = bn0b_ref[...] if has_expand else None
    wdw = w_dw_ref[...]
    bn1b = bn1b_ref[...]
    w_ser = w_ser_ref[...]
    b_ser = b_ser_ref[...]
    w_see = w_see_ref[...]
    b_see = b_see_ref[...]
    w_prj = w_prj_ref[...]
    bn2b = bn2b_ref[...]
    w_taps = [wdw[:, t:t + 1] for t in range(k * k)]          # hoisted (oup, 1) columns

    # ---- SAME-padding boundary masks, factored per-row / per-col, built once --------
    col = jax.lax.broadcasted_iota(jnp.int32, (1, F), 1)
    w_pos = col % W                       # one int op per step, amortized over all taps
    row_masks, col_masks = {}, {}
    for di in range(k):
        hi = di - pb
        if hi > 0:
            row_masks[di] = col < (H - hi) * W
        elif hi < 0:
            row_masks[di] = col >= (-hi) * W
    for dj in range(k):
        wj = dj - pb
        if wj > 0:
            col_masks[dj] = w_pos < (W - wj)
        elif wj < 0:
            col_masks[dj] = w_pos >= (-wj)

    for n in range(nb):
        x_in = x_ref[n].astype(jnp.float32)                   # (Cin, F)

        # ---- expand 1x1 (folded BN) + swish (MXU) --------------------------------
        if has_expand:
            h = jnp.dot(w_exp, x_in, preferred_element_type=jnp.float32) + bn0b
            h = _swish(h)
        else:
            h = x_in
        C = h.shape[0]

        # ---- depthwise kxk, stride 1, SAME (XLU rolls + VPU FMAs) -----------------
        acc = jnp.zeros((C, F), jnp.float32)
        for di in range(k):
            hi = di - pb
            if hi == 0:
                hrow = h
            else:
                hrow = pltpu.roll(h, (-hi * W) % F, axis=1)
                hrow = jnp.where(row_masks[di], hrow, 0.0)
            for dj in range(k):
                wj = dj - pb
                if wj == 0:
                    tap = hrow
                else:
                    tap = pltpu.roll(hrow, (-wj) % F, axis=1)
                    tap = jnp.where(col_masks[dj], tap, 0.0)
                acc = acc + tap * w_taps[di * k + dj]
        y = _swish(acc + bn1b)                                 # (C, F)

        # ---- squeeze & excite (gate is (C,1); fully in-register) ------------------
        pooled = jnp.mean(y, axis=1, keepdims=True)            # (C, 1)
        s = _swish(jnp.sum(pooled * w_ser, axis=0, keepdims=True) + b_ser)   # (1, n_sq)
        gate = jax.nn.sigmoid(jnp.sum(w_see * s, axis=1, keepdims=True) + b_see)
        y = y * gate

        # ---- project 1x1 (folded BN) + residual (MXU) ------------------------------
        out = jnp.dot(w_prj, y, preferred_element_type=jnp.float32) + bn2b
        if use_skip:
            out = out + x_in
        o_ref[n] = out.astype(o_ref.dtype)


def mbconv_forward(x_nchw, params, *, k, expand_ratio, id_skip=True, stride=1,
                   images_per_step=None):
    """Fused MBConv forward. Input/output are NCHW (matching the PyTorch module)."""
    N, Cin, H, W = x_nchw.shape
    assert stride == 1, "fused kernel implements the stride=1 (id-skip) MBConv only"
    assert k % 2 == 1, "SAME depthwise path assumes odd kernel size"
    F = H * W
    has_expand = expand_ratio != 1
    oup = Cin * expand_ratio
    cout = params["w_proj"].shape[1]
    n_sq = params["w_se_red"].shape[1]
    use_skip = bool(id_skip and stride == 1 and Cin == cout)

    # Whole batch per grid step by default: amortizes per-step overhead on the single
    # TensorCore of v5e/v6e. (See v7x TODO at top for multi-TC / large-size tiling.)
    if images_per_step is None:
        images_per_step = N
    nb = max(1, min(int(images_per_step), N))
    while N % nb != 0:
        nb -= 1

    x = x_nchw.reshape(N, Cin, F)                              # free reshape, no transpose
    f32 = jnp.float32

    # ---- fold BN scales into conv weights (tiny host/XLA ops, once) ----------------
    if has_expand:
        w_exp_f = (params["w_expand"] * params["bn0_scale"][None, :]).T.astype(f32)  # (oup, Cin)
        bn0b = params["bn0_shift"].reshape(oup, 1).astype(f32)
    else:                                                       # never read by the kernel
        w_exp_f = jnp.zeros((Cin, Cin), f32)
        bn0b = jnp.zeros((Cin, 1), f32)
    w_dw_f = (params["w_dw"] * params["bn1_scale"][None, None, :]
              ).reshape(k * k, oup).T.astype(f32)               # (oup, k*k)
    bn1b = params["bn1_shift"].reshape(oup, 1).astype(f32)
    w_prj_f = (params["w_proj"] * params["bn2_scale"][None, :]).T.astype(f32)         # (cout, oup)
    bn2b = params["bn2_shift"].reshape(cout, 1).astype(f32)

    args = (
        x,
        w_exp_f, bn0b,
        w_dw_f, bn1b,
        params["w_se_red"], params["b_se_red"].reshape(1, n_sq),
        params["w_se_exp"].T, params["b_se_exp"].reshape(oup, 1),
        w_prj_f, bn2b,
    )

    # Params: whole-array VMEM residency (grid-invariant -> fetched once, no revolving buffers)
    vmem = pl.BlockSpec(memory_space=pltpu.MemorySpace.VMEM)
    in_specs = [pl.BlockSpec((nb, Cin, F), lambda n: (n, 0, 0))] + [vmem] * (len(args) - 1)

    flops = int(2 * N * F * oup * (Cin + k * k + cout) + 4 * N * oup * n_sq)
    transcendentals = int(2 * N * F * oup + N * (n_sq + oup))
    param_bytes = sum(int(a.size) * a.dtype.itemsize for a in args[1:])
    bytes_accessed = int(x.size * x.dtype.itemsize
                         + N * cout * F * x.dtype.itemsize + param_bytes)

    y = pl.pallas_call(
        functools.partial(_mbconv_fused_kernel, H=H, W=W, k=k, nb=nb,
                          has_expand=has_expand, use_skip=use_skip),
        out_shape=jax.ShapeDtypeStruct((N, cout, F), x_nchw.dtype),
        grid=(N // nb,),
        in_specs=in_specs,
        out_specs=pl.BlockSpec((nb, cout, F), lambda n: (n, 0, 0)),
        compiler_params=pltpu.CompilerParams(
            dimension_semantics=("parallel",),
            vmem_limit_bytes=32 * 1024 * 1024,
        ),
        cost_estimate=pl.CostEstimate(flops=flops, transcendentals=transcendentals,
                                      bytes_accessed=bytes_accessed),
    )(*args)
    return y.reshape(N, cout, H, W)


# ----------------------------------------------------------------------------
# Parameter init (deterministic, synthetic) — BN folded to scale/shift
# ----------------------------------------------------------------------------
def _fold_bn(gamma, beta, mean, var, eps):
    scale = gamma / jnp.sqrt(var + eps)
    shift = beta - mean * scale
    return scale, shift


def init_params(key, *, inp, expand_ratio, k, se_ratio, out_filters, eps):
    oup = inp * expand_ratio
    n_sq = max(1, int(inp * se_ratio))
    keys = jax.random.split(key, 19)

    def bn(k1, k2, k3, k4, c):
        gamma = 1.0 + 0.1 * jax.random.normal(k1, (c,), jnp.float32)
        beta = 0.1 * jax.random.normal(k2, (c,), jnp.float32)
        mean = 0.1 * jax.random.normal(k3, (c,), jnp.float32)
        var = jnp.abs(1.0 + 0.1 * jax.random.normal(k4, (c,), jnp.float32))
        return _fold_bn(gamma, beta, mean, var, eps)

    p = {}
    p["w_expand"] = 0.2 * jax.random.normal(keys[0], (inp, oup), jnp.float32)
    p["bn0_scale"], p["bn0_shift"] = bn(keys[1], keys[2], keys[3], keys[4], oup)
    p["w_dw"] = 0.2 * jax.random.normal(keys[5], (k, k, oup), jnp.float32)
    p["bn1_scale"], p["bn1_shift"] = bn(keys[6], keys[7], keys[8], keys[9], oup)
    p["w_se_red"] = 0.2 * jax.random.normal(keys[10], (oup, n_sq), jnp.float32)
    p["b_se_red"] = 0.1 * jax.random.normal(keys[11], (n_sq,), jnp.float32)
    p["w_se_exp"] = 0.2 * jax.random.normal(keys[12], (n_sq, oup), jnp.float32)
    p["b_se_exp"] = 0.1 * jax.random.normal(keys[13], (oup,), jnp.float32)
    p["w_proj"] = 0.2 * jax.random.normal(keys[14], (oup, out_filters), jnp.float32)
    p["bn2_scale"], p["bn2_shift"] = bn(keys[15], keys[16], keys[17], keys[18], out_filters)
    return p


# ----------------------------------------------------------------------------
# Pure-JAX reference (same math, no Pallas, BN applied post-conv) for the check
# ----------------------------------------------------------------------------
def mbconv_reference(x_nchw, p, *, k, expand_ratio, id_skip=True):
    HI = jax.lax.Precision.HIGHEST
    N, Cin, H, W = x_nchw.shape
    x = jnp.transpose(x_nchw, (0, 2, 3, 1))
    inputs = x
    if expand_ratio != 1:
        x = (jnp.einsum("nhwc,cd->nhwd", x, p["w_expand"], precision=HI)
             * p["bn0_scale"] + p["bn0_shift"])
        x = _swish(x)
    pad = k - 1
    pb, pe = pad // 2, pad - pad // 2
    xp = jnp.pad(x, ((0, 0), (pb, pe), (pb, pe), (0, 0)))
    acc = jnp.zeros_like(x)
    for di in range(k):
        for dj in range(k):
            acc = acc + xp[:, di:di + H, dj:dj + W, :] * p["w_dw"][di, dj, :]
    x = _swish(acc * p["bn1_scale"] + p["bn1_shift"])
    pooled = jnp.mean(x, axis=(1, 2))
    s = _swish(jnp.dot(pooled, p["w_se_red"], precision=HI) + p["b_se_red"])
    gate = jax.nn.sigmoid(jnp.dot(s, p["w_se_exp"], precision=HI) + p["b_se_exp"])
    x = x * gate[:, None, None, :]
    y = (jnp.einsum("nhwc,cd->nhwd", x, p["w_proj"], precision=HI)
         * p["bn2_scale"] + p["bn2_shift"])
    cout = p["w_proj"].shape[1]
    if id_skip and cout == Cin:
        y = y + inputs
    return jnp.transpose(y, (0, 3, 1, 2))


if __name__ == "__main__":
    # block_args: input_filters=4, output_filters=4, expand_ratio=6, kernel_size=3,
    #             stride=1, se_ratio=0.25, id_skip=True; bn_eps=1e-3
    INP, OUT, EXPAND, K, SE_RATIO, EPS = 4, 4, 6, 3, 0.25, 1e-3
    N, H, W = 2, 16, 16

    key = jax.random.PRNGKey(0)
    kx, kp = jax.random.split(key)
    x = jax.random.normal(kx, (N, INP, H, W), jnp.float32)
    params = init_params(kp, inp=INP, expand_ratio=EXPAND, k=K,
                         se_ratio=SE_RATIO, out_filters=OUT, eps=EPS)

    out = mbconv_forward(x, params, k=K, expand_ratio=EXPAND, id_skip=True, stride=1)
    out = jax.block_until_ready(out)

    ref = mbconv_reference(x, params, k=K, expand_ratio=EXPAND, id_skip=True)
    assert out.shape == (N, OUT, H, W)
    assert jnp.allclose(out, ref, atol=2e-4, rtol=2e-4), "mismatch vs reference"
    print("KERNEL_OK")
</pallas_src>

<mosaic_0001>
module attributes {stable_mosaic.version = 11 : i64} {
  func.func @_mbconv_fused_kernel(%arg0: i32, %arg1: memref<2x4x256xf32, #tpu.memory_space<vmem>>, %arg2: memref<24x4xf32, #tpu.memory_space<vmem>>, %arg3: memref<24x1xf32, #tpu.memory_space<vmem>>, %arg4: memref<24x9xf32, #tpu.memory_space<vmem>>, %arg5: memref<24x1xf32, #tpu.memory_space<vmem>>, %arg6: memref<24x1xf32, #tpu.memory_space<vmem>>, %arg7: memref<1x1xf32, #tpu.memory_space<vmem>>, %arg8: memref<24x1xf32, #tpu.memory_space<vmem>>, %arg9: memref<24x1xf32, #tpu.memory_space<vmem>>, %arg10: memref<4x24xf32, #tpu.memory_space<vmem>>, %arg11: memref<4x1xf32, #tpu.memory_space<vmem>>, %arg12: memref<2x4x256xf32, #tpu.memory_space<vmem>>) attributes {dimension_semantics = [#tpu.dimension_semantics<parallel>], iteration_bounds = array<i64: 1>, scalar_prefetch = 0 : i64, scratch_operands = 0 : i64, tpu.core_type = #tpu.core_type<tc>, window_params = [{transform_indices = @transform_0, window_bounds = array<i64: 2, 4, 256>}, {pipeline_mode = #tpu.pipeline_mode<synchronous>, transform_indices = @transform_1, window_bounds = array<i64: 24, 4>}, {pipeline_mode = #tpu.pipeline_mode<synchronous>, transform_indices = @transform_2, window_bounds = array<i64: 24, 1>}, {pipeline_mode = #tpu.pipeline_mode<synchronous>, transform_indices = @transform_3, window_bounds = array<i64: 24, 9>}, {pipeline_mode = #tpu.pipeline_mode<synchronous>, transform_indices = @transform_4, window_bounds = array<i64: 24, 1>}, {pipeline_mode = #tpu.pipeline_mode<synchronous>, transform_indices = @transform_5, window_bounds = array<i64: 24, 1>}, {pipeline_mode = #tpu.pipeline_mode<synchronous>, transform_indices = @transform_6, window_bounds = array<i64: 1, 1>}, {pipeline_mode = #tpu.pipeline_mode<synchronous>, transform_indices = @transform_7, window_bounds = array<i64: 24, 1>}, {pipeline_mode = #tpu.pipeline_mode<synchronous>, transform_indices = @transform_8, window_bounds = array<i64: 24, 1>}, {pipeline_mode = #tpu.pipeline_mode<synchronous>, transform_indices = @transform_9, window_bounds = array<i64: 4, 24>}, {pipeline_mode = #tpu.pipeline_mode<synchronous>, transform_indices = @transform_10, window_bounds = array<i64: 4, 1>}, {transform_indices = @transform_11, window_bounds = array<i64: 2, 4, 256>}]} {
    %c0 = arith.constant 0 : index
    %c0_0 = arith.constant 0 : index
    %0 = vector.load %arg2[%c0, %c0_0] : memref<24x4xf32, #tpu.memory_space<vmem>>, vector<24x4xf32>
    %c0_1 = arith.constant 0 : index
    %c0_2 = arith.constant 0 : index
    %1 = vector.load %arg3[%c0_1, %c0_2] : memref<24x1xf32, #tpu.memory_space<vmem>>, vector<24x1xf32>
    %c0_3 = arith.constant 0 : index
    %c0_4 = arith.constant 0 : index
    %2 = vector.load %arg4[%c0_3, %c0_4] : memref<24x9xf32, #tpu.memory_space<vmem>>, vector<24x9xf32>
    %c0_5 = arith.constant 0 : index
    %c0_6 = arith.constant 0 : index
    %3 = vector.load %arg5[%c0_5, %c0_6] : memref<24x1xf32, #tpu.memory_space<vmem>>, vector<24x1xf32>
    %c0_7 = arith.constant 0 : index
    %c0_8 = arith.constant 0 : index
    %4 = vector.load %arg6[%c0_7, %c0_8] : memref<24x1xf32, #tpu.memory_space<vmem>>, vector<24x1xf32>
    %c0_9 = arith.constant 0 : index
    %c0_10 = arith.constant 0 : index
    %5 = vector.load %arg7[%c0_9, %c0_10] : memref<1x1xf32, #tpu.memory_space<vmem>>, vector<1x1xf32>
    %c0_11 = arith.constant 0 : index
    %c0_12 = arith.constant 0 : index
    %6 = vector.load %arg8[%c0_11, %c0_12] : memref<24x1xf32, #tpu.memory_space<vmem>>, vector<24x1xf32>
    %c0_13 = arith.constant 0 : index
    %c0_14 = arith.constant 0 : index
    %7 = vector.load %arg9[%c0_13, %c0_14] : memref<24x1xf32, #tpu.memory_space<vmem>>, vector<24x1xf32>
    %c0_15 = arith.constant 0 : index
    %c0_16 = arith.constant 0 : index
    %8 = vector.load %arg10[%c0_15, %c0_16] : memref<4x24xf32, #tpu.memory_space<vmem>>, vector<4x24xf32>
    %c0_17 = arith.constant 0 : index
    %c0_18 = arith.constant 0 : index
    %9 = vector.load %arg11[%c0_17, %c0_18] : memref<4x1xf32, #tpu.memory_space<vmem>>, vector<4x1xf32>
    %10 = vector.extract_strided_slice %2 {offsets = [0, 0], sizes = [24, 1], strides = [1, 1]} : vector<24x9xf32> to vector<24x1xf32>
    %11 = vector.extract_strided_slice %2 {offsets = [0, 1], sizes = [24, 1], strides = [1, 1]} : vector<24x9xf32> to vector<24x1xf32>
    %12 = vector.extract_strided_slice %2 {offsets = [0, 2], sizes = [24, 1], strides = [1, 1]} : vector<24x9xf32> to vector<24x1xf32>
    %13 = vector.extract_strided_slice %2 {offsets = [0, 3], sizes = [24, 1], strides = [1, 1]} : vector<24x9xf32> to vector<24x1xf32>
    %14 = vector.extract_strided_slice %2 {offsets = [0, 4], sizes = [24, 1], strides = [1, 1]} : vector<24x9xf32> to vector<24x1xf32>
    %15 = vector.extract_strided_slice %2 {offsets = [0, 5], sizes = [24, 1], strides = [1, 1]} : vector<24x9xf32> to vector<24x1xf32>
    %16 = vector.extract_strided_slice %2 {offsets = [0, 6], sizes = [24, 1], strides = [1, 1]} : vector<24x9xf32> to vector<24x1xf32>
    %17 = vector.extract_strided_slice %2 {offsets = [0, 7], sizes = [24, 1], strides = [1, 1]} : vector<24x9xf32> to vector<24x1xf32>
    %18 = vector.extract_strided_slice %2 {offsets = [0, 8], sizes = [24, 1], strides = [1, 1]} : vector<24x9xf32> to vector<24x1xf32>
    %19 = tpu.iota {dimensions = array<i32: 1>} : vector<1x256xi32>
    %c16_i32 = arith.constant 16 : i32
    %c0_i32 = arith.constant 0 : i32
    %20 = arith.cmpi eq, %c16_i32, %c0_i32 : i32
    %c1_i32 = arith.constant 1 : i32
    %21 = arith.select %20, %c1_i32, %c16_i32 : i32
    %22 = vector.broadcast %21 : i32 to vector<1x256xi32>
    %23 = arith.remsi %19, %22 : vector<1x256xi32>
    %c0_i32_19 = arith.constant 0 : i32
    %24 = vector.broadcast %c0_i32_19 : i32 to vector<1x256xi32>
    %25 = arith.cmpi ne, %23, %24 : vector<1x256xi32>
    %c0_i32_20 = arith.constant 0 : i32
    %26 = vector.broadcast %c0_i32_20 : i32 to vector<1x256xi32>
    %27 = arith.cmpi slt, %23, %26 : vector<1x256xi32>
    %c0_i32_21 = arith.constant 0 : i32
    %28 = arith.cmpi slt, %21, %c0_i32_21 : i32
    %29 = vector.broadcast %28 : i1 to vector<1x256xi1>
    %30 = vector.broadcast %29 : vector<1x256xi1> to vector<1x256xi1>
    %31 = arith.xori %27, %30 : vector<1x256xi1>
    %32 = arith.andi %31, %25 : vector<1x256xi1>
    %33 = vector.broadcast %21 : i32 to vector<1x256xi32>
    %34 = arith.addi %23, %33 : vector<1x256xi32>
    %35 = arith.select %32, %34, %23 : vector<1x256xi1>, vector<1x256xi32>
    %c16_i32_22 = arith.constant 16 : i32
    %36 = vector.broadcast %c16_i32_22 : i32 to vector<1x256xi32>
    %37 = arith.cmpi sge, %19, %36 : vector<1x256xi32>
    %c240_i32 = arith.constant 240 : i32
    %38 = vector.broadcast %c240_i32 : i32 to vector<1x256xi32>
    %39 = arith.cmpi slt, %19, %38 : vector<1x256xi32>
    %c1_i32_23 = arith.constant 1 : i32
    %40 = vector.broadcast %c1_i32_23 : i32 to vector<1x256xi32>
    %41 = arith.cmpi sge, %35, %40 : vector<1x256xi32>
    %c15_i32 = arith.constant 15 : i32
    %42 = vector.broadcast %c15_i32 : i32 to vector<1x256xi32>
    %43 = arith.cmpi slt, %35, %42 : vector<1x256xi32>
    %c0_24 = arith.constant 0 : index
    %c0_25 = arith.constant 0 : index
    %c0_26 = arith.constant 0 : index
    %44 = vector.load %arg1[%c0_24, %c0_25, %c0_26] : memref<2x4x256xf32, #tpu.memory_space<vmem>>, vector<1x4x256xf32>
    %45 = vector.shape_cast %44 : vector<1x4x256xf32> to vector<4x256xf32>
    %cst = arith.constant dense<0.000000e+00> : vector<24x256xf32>
    %46 = tpu.matmul %0, %45, %cst {dimension_numbers = #tpu.dot_dimension_numbers<[1], [0], [0], [1], [0, 0, 1, 1], [], []>} : vector<24x4xf32>, vector<4x256xf32>, vector<24x256xf32> -> vector<24x256xf32>
    %47 = vector.broadcast %1 : vector<24x1xf32> to vector<24x256xf32>
    %48 = arith.addf %46, %47 : vector<24x256xf32>
    %49 = arith.negf %48 : vector<24x256xf32>
    %50 = math.exp %49 : vector<24x256xf32>
    %cst_27 = arith.constant 1.000000e+00 : f32
    %51 = vector.broadcast %cst_27 : f32 to vector<24x256xf32>
    %52 = arith.addf %51, %50 : vector<24x256xf32>
    %53 = arith.divf %51, %52 : vector<24x256xf32>
    %54 = arith.mulf %48, %53 : vector<24x256xf32>
    %cst_28 = arith.constant 0.000000e+00 : f32
    %55 = vector.broadcast %cst_28 : f32 to vector<24x256xf32>
    %c16_i32_29 = arith.constant 16 : i32
    %56 = tpu.dynamic_rotate %54 by %c16_i32_29 dim 1 : vector<24x256xf32>, i32 -> vector<24x256xf32>
    %cst_30 = arith.constant 0.000000e+00 : f32
    %57 = vector.shape_cast %37 : vector<1x256xi1> to vector<1x256xi1>
    %58 = vector.broadcast %57 : vector<1x256xi1> to vector<24x256xi1>
    %59 = vector.broadcast %cst_30 : f32 to vector<24x256xf32>
    %60 = arith.select %58, %56, %59 : vector<24x256xi1>, vector<24x256xf32>
    %c1_i32_31 = arith.constant 1 : i32
    %61 = tpu.dynamic_rotate %60 by %c1_i32_31 dim 1 : vector<24x256xf32>, i32 -> vector<24x256xf32>
    %cst_32 = arith.constant 0.000000e+00 : f32
    %62 = vector.shape_cast %41 : vector<1x256xi1> to vector<1x256xi1>
    %63 = vector.broadcast %62 : vector<1x256xi1> to vector<24x256xi1>
    %64 = vector.broadcast %cst_32 : f32 to vector<24x256xf32>
    %65 = arith.select %63, %61, %64 : vector<24x256xi1>, vector<24x256xf32>
    %66 = vector.broadcast %10 : vector<24x1xf32> to vector<24x256xf32>
    %67 = arith.mulf %65, %66 : vector<24x256xf32>
    %68 = arith.addf %55, %67 : vector<24x256xf32>
    %69 = vector.broadcast %11 : vector<24x1xf32> to vector<24x256xf32>
    %70 = arith.mulf %60, %69 : vector<24x256xf32>
    %71 = arith.addf %68, %70 : vector<24x256xf32>
    %c255_i32 = arith.constant 255 : i32
    %72 = tpu.dynamic_rotate %60 by %c255_i32 dim 1 : vector<24x256xf32>, i32 -> vector<24x256xf32>
    %cst_33 = arith.constant 0.000000e+00 : f32
    %73 = vector.shape_cast %43 : vector<1x256xi1> to vector<1x256xi1>
    %74 = vector.broadcast %73 : vector<1x256xi1> to vector<24x256xi1>
    %75 = vector.broadcast %cst_33 : f32 to vector<24x256xf32>
    %76 = arith.select %74, %72, %75 : vector<24x256xi1>, vector<24x256xf32>
    %77 = vector.broadcast %12 : vector<24x1xf32> to vector<24x256xf32>
    %78 = arith.mulf %76, %77 : vector<24x256xf32>
    %79 = arith.addf %71, %78 : vector<24x256xf32>
    %c1_i32_34 = arith.constant 1 : i32
    %80 = tpu.dynamic_rotate %54 by %c1_i32_34 dim 1 : vector<24x256xf32>, i32 -> vector<24x256xf32>
    %cst_35 = arith.constant 0.000000e+00 : f32
    %81 = vector.shape_cast %41 : vector<1x256xi1> to vector<1x256xi1>
    %82 = vector.broadcast %81 : vector<1x256xi1> to vector<24x256xi1>
    %83 = vector.broadcast %cst_35 : f32 to vector<24x256xf32>
    %84 = arith.select %82, %80, %83 : vector<24x256xi1>, vector<24x256xf32>
    %85 = vector.broadcast %13 : vector<24x1xf32> to vector<24x256xf32>
    %86 = arith.mulf %84, %85 : vector<24x256xf32>
    %87 = arith.addf %79, %86 : vector<24x256xf32>
    %88 = vector.broadcast %14 : vector<24x1xf32> to vector<24x256xf32>
    %89 = arith.mulf %54, %88 : vector<24x256xf32>
    %90 = arith.addf %87, %89 : vector<24x256xf32>
    %c255_i32_36 = arith.constant 255 : i32
    %91 = tpu.dynamic_rotate %54 by %c255_i32_36 dim 1 : vector<24x256xf32>, i32 -> vector<24x256xf32>
    %cst_37 = arith.constant 0.000000e+00 : f32
    %92 = vector.shape_cast %43 : vector<1x256xi1> to vector<1x256xi1>
    %93 = vector.broadcast %92 : vector<1x256xi1> to vector<24x256xi1>
    %94 = vector.broadcast %cst_37 : f32 to vector<24x256xf32>
    %95 = arith.select %93, %91, %94 : vector<24x256xi1>, vector<24x256xf32>
    %96 = vector.broadcast %15 : vector<24x1xf32> to vector<24x256xf32>
    %97 = arith.mulf %95, %96 : vector<24x256xf32>
    %98 = arith.addf %90, %97 : vector<24x256xf32>
    %c240_i32_38 = arith.constant 240 : i32
    %99 = tpu.dynamic_rotate %54 by %c240_i32_38 dim 1 : vector<24x256xf32>, i32 -> vector<24x256xf32>
    %cst_39 = arith.constant 0.000000e+00 : f32
    %100 = vector.shape_cast %39 : vector<1x256xi1> to vector<1x256xi1>
    %101 = vector.broadcast %100 : vector<1x256xi1> to vector<24x256xi1>
    %102 = vector.broadcast %cst_39 : f32 to vector<24x256xf32>
    %103 = arith.select %101, %99, %102 : vector<24x256xi1>, vector<24x256xf32>
    %c1_i32_40 = arith.constant 1 : i32
    %104 = tpu.dynamic_rotate %103 by %c1_i32_40 dim 1 : vector<24x256xf32>, i32 -> vector<24x256xf32>
    %cst_41 = arith.constant 0.000000e+00 : f32
    %105 = vector.shape_cast %41 : vector<1x256xi1> to vector<1x256xi1>
    %106 = vector.broadcast %105 : vector<1x256xi1> to vector<24x256xi1>
    %107 = vector.broadcast %cst_41 : f32 to vector<24x256xf32>
    %108 = arith.select %106, %104, %107 : vector<24x256xi1>, vector<24x256xf32>
    %109 = vector.broadcast %16 : vector<24x1xf32> to vector<24x256xf32>
    %110 = arith.mulf %108, %109 : vector<24x256xf32>
    %111 = arith.addf %98, %110 : vector<24x256xf32>
    %112 = vector.broadcast %17 : vector<24x1xf32> to vector<24x256xf32>
    %113 = arith.mulf %103, %112 : vector<24x256xf32>
    %114 = arith.addf %111, %113 : vector<24x256xf32>
    %c255_i32_42 = arith.constant 255 : i32
    %115 = tpu.dynamic_rotate %103 by %c255_i32_42 dim 1 : vector<24x256xf32>, i32 -> vector<24x256xf32>
    %cst_43 = arith.constant 0.000000e+00 : f32
    %116 = vector.shape_cast %43 : vector<1x256xi1> to vector<1x256xi1>
    %117 = vector.broadcast %116 : vector<1x256xi1> to vector<24x256xi1>
    %118 = vector.broadcast %cst_43 : f32 to vector<24x256xf32>
    %119 = arith.select %117, %115, %118 : vector<24x256xi1>, vector<24x256xf32>
    %120 = vector.broadcast %18 : vector<24x1xf32> to vector<24x256xf32>
    %121 = arith.mulf %119, %120 : vector<24x256xf32>
    %122 = arith.addf %114, %121 : vector<24x256xf32>
    %123 = vector.broadcast %3 : vector<24x1xf32> to vector<24x256xf32>
    %124 = arith.addf %122, %123 : vector<24x256xf32>
    %125 = arith.negf %124 : vector<24x256xf32>
    %126 = math.exp %125 : vector<24x256xf32>
    %cst_44 = arith.constant 1.000000e+00 : f32
    %127 = vector.broadcast %cst_44 : f32 to vector<24x256xf32>
    %128 = arith.addf %127, %126 : vector<24x256xf32>
    %129 = arith.divf %127, %128 : vector<24x256xf32>
    %130 = arith.mulf %124, %129 : vector<24x256xf32>
    %cst_45 = arith.constant dense<0.000000e+00> : vector<24xf32>
    %131 = vector.multi_reduction <add>, %130, %cst_45 [1] : vector<24x256xf32> to vector<24xf32>
    %132 = vector.shape_cast %131 : vector<24xf32> to vector<24x1xf32>
    %cst_46 = arith.constant 2.560000e+02 : f32
    %133 = vector.broadcast %cst_46 : f32 to vector<24x1xf32>
    %134 = arith.divf %132, %133 : vector<24x1xf32>
    %135 = arith.mulf %134, %4 : vector<24x1xf32>
    %cst_47 = arith.constant dense<0.000000e+00> : vector<1xf32>
    %136 = vector.multi_reduction <add>, %135, %cst_47 [0] : vector<24x1xf32> to vector<1xf32>
    %137 = vector.shape_cast %136 : vector<1xf32> to vector<1x1xf32>
    %138 = arith.addf %137, %5 : vector<1x1xf32>
    %139 = arith.negf %138 : vector<1x1xf32>
    %140 = math.exp %139 : vector<1x1xf32>
    %cst_48 = arith.constant 1.000000e+00 : f32
    %141 = vector.broadcast %cst_48 : f32 to vector<1x1xf32>
    %142 = arith.addf %141, %140 : vector<1x1xf32>
    %143 = arith.divf %141, %142 : vector<1x1xf32>
    %144 = arith.mulf %138, %143 : vector<1x1xf32>
    %145 = vector.broadcast %144 : vector<1x1xf32> to vector<24x1xf32>
    %146 = arith.mulf %6, %145 : vector<24x1xf32>
    %cst_49 = arith.constant dense<0.000000e+00> : vector<24xf32>
    %147 = vector.multi_reduction <add>, %146, %cst_49 [1] : vector<24x1xf32> to vector<24xf32>
    %148 = vector.shape_cast %147 : vector<24xf32> to vector<24x1xf32>
    %149 = arith.addf %148, %7 : vector<24x1xf32>
    %150 = arith.negf %149 : vector<24x1xf32>
    %151 = math.exp %150 : vector<24x1xf32>
    %cst_50 = arith.constant 1.000000e+00 : f32
    %152 = vector.broadcast %cst_50 : f32 to vector<24x1xf32>
    %153 = arith.addf %152, %151 : vector<24x1xf32>
    %154 = arith.divf %152, %153 : vector<24x1xf32>
    %155 = vector.broadcast %154 : vector<24x1xf32> to vector<24x256xf32>
    %156 = arith.mulf %130, %155 : vector<24x256xf32>
    %cst_51 = arith.constant dense<0.000000e+00> : vector<4x256xf32>
    %157 = tpu.matmul %8, %156, %cst_51 {dimension_numbers = #tpu.dot_dimension_numbers<[1], [0], [0], [1], [0, 0, 1, 1], [], []>} : vector<4x24xf32>, vector<24x256xf32>, vector<4x256xf32> -> vector<4x256xf32>
    %158 = vector.broadcast %9 : vector<4x1xf32> to vector<4x256xf32>
    %159 = arith.addf %157, %158 : vector<4x256xf32>
    %160 = arith.addf %159, %45 : vector<4x256xf32>
    %c0_52 = arith.constant 0 : index
    %c0_53 = arith.constant 0 : index
    %c0_54 = arith.constant 0 : index
    %161 = vector.load %arg12[%c0_52, %c0_53, %c0_54] : memref<2x4x256xf32, #tpu.memory_space<vmem>>, vector<1x4x256xf32>
    %162 = vector.shape_cast %161 : vector<1x4x256xf32> to vector<4x256xf32>
    %163 = vector.shape_cast %160 : vector<4x256xf32> to vector<1x4x256xf32>
    tpu.vector_store %arg12[%c0_52, %c0_53, %c0_54], %163 {strides = array<i32>} : memref<2x4x256xf32, #tpu.memory_space<vmem>>, vector<1x4x256xf32>,
    %c1 = arith.constant 1 : index
    %c0_55 = arith.constant 0 : index
    %c0_56 = arith.constant 0 : index
    %164 = vector.load %arg1[%c1, %c0_55, %c0_56] : memref<2x4x256xf32, #tpu.memory_space<vmem>>, vector<1x4x256xf32>
    %165 = vector.shape_cast %164 : vector<1x4x256xf32> to vector<4x256xf32>
    %cst_57 = arith.constant dense<0.000000e+00> : vector<24x256xf32>
    %166 = tpu.matmul %0, %165, %cst_57 {dimension_numbers = #tpu.dot_dimension_numbers<[1], [0], [0], [1], [0, 0, 1, 1], [], []>} : vector<24x4xf32>, vector<4x256xf32>, vector<24x256xf32> -> vector<24x256xf32>
    %167 = vector.broadcast %1 : vector<24x1xf32> to vector<24x256xf32>
    %168 = arith.addf %166, %167 : vector<24x256xf32>
    %169 = arith.negf %168 : vector<24x256xf32>
    %170 = math.exp %169 : vector<24x256xf32>
    %cst_58 = arith.constant 1.000000e+00 : f32
    %171 = vector.broadcast %cst_58 : f32 to vector<24x256xf32>
    %172 = arith.addf %171, %170 : vector<24x256xf32>
    %173 = arith.divf %171, %172 : vector<24x256xf32>
    %174 = arith.mulf %168, %173 : vector<24x256xf32>
    %cst_59 = arith.constant 0.000000e+00 : f32
    %175 = vector.broadcast %cst_59 : f32 to vector<24x256xf32>
    %c16_i32_60 = arith.constant 16 : i32
    %176 = tpu.dynamic_rotate %174 by %c16_i32_60 dim 1 : vector<24x256xf32>, i32 -> vector<24x256xf32>
    %cst_61 = arith.constant 0.000000e+00 : f32
    %177 = vector.shape_cast %37 : vector<1x256xi1> to vector<1x256xi1>
    %178 = vector.broadcast %177 : vector<1x256xi1> to vector<24x256xi1>
    %179 = vector.broadcast %cst_61 : f32 to vector<24x256xf32>
    %180 = arith.select %178, %176, %179 : vector<24x256xi1>, vector<24x256xf32>
    %c1_i32_62 = arith.constant 1 : i32
    %181 = tpu.dynamic_rotate %180 by %c1_i32_62 dim 1 : vector<24x256xf32>, i32 -> vector<24x256xf32>
    %cst_63 = arith.constant 0.000000e+00 : f32
    %182 = vector.shape_cast %41 : vector<1x256xi1> to vector<1x256xi1>
    %183 = vector.broadcast %182 : vector<1x256xi1> to vector<24x256xi1>
    %184 = vector.broadcast %cst_63 : f32 to vector<24x256xf32>
    %185 = arith.select %183, %181, %184 : vector<24x256xi1>, vector<24x256xf32>
    %186 = vector.broadcast %10 : vector<24x1xf32> to vector<24x256xf32>
    %187 = arith.mulf %185, %186 : vector<24x256xf32>
    %188 = arith.addf %175, %187 : vector<24x256xf32>
    %189 = vector.broadcast %11 : vector<24x1xf32> to vector<24x256xf32>
    %190 = arith.mulf %180, %189 : vector<24x256xf32>
    %191 = arith.addf %188, %190 : vector<24x256xf32>
    %c255_i32_64 = arith.constant 255 : i32
    %192 = tpu.dynamic_rotate %180 by %c255_i32_64 dim 1 : vector<24x256xf32>, i32 -> vector<24x256xf32>
    %cst_65 = arith.constant 0.000000e+00 : f32
    %193 = vector.shape_cast %43 : vector<1x256xi1> to vector<1x256xi1>
    %194 = vector.broadcast %193 : vector<1x256xi1> to vector<24x256xi1>
    %195 = vector.broadcast %cst_65 : f32 to vector<24x256xf32>
    %196 = arith.select %194, %192, %195 : vector<24x256xi1>, vector<24x256xf32>
    %197 = vector.broadcast %12 : vector<24x1xf32> to vector<24x256xf32>
    %198 = arith.mulf %196, %197 : vector<24x256xf32>
    %199 = arith.addf %191, %198 : vector<24x256xf32>
    %c1_i32_66 = arith.constant 1 : i32
    %200 = tpu.dynamic_rotate %174 by %c1_i32_66 dim 1 : vector<24x256xf32>, i32 -> vector<24x256xf32>
    %cst_67 = arith.constant 0.000000e+00 : f32
    %201 = vector.shape_cast %41 : vector<1x256xi1> to vector<1x256xi1>
    %202 = vector.broadcast %201 : vector<1x256xi1> to vector<24x256xi1>
    %203 = vector.broadcast %cst_67 : f32 to vector<24x256xf32>
    %204 = arith.select %202, %200, %203 : vector<24x256xi1>, vector<24x256xf32>
    %205 = vector.broadcast %13 : vector<24x1xf32> to vector<24x256xf32>
    %206 = arith.mulf %204, %205 : vector<24x256xf32>
    %207 = arith.addf %199, %206 : vector<24x256xf32>
    %208 = vector.broadcast %14 : vector<24x1xf32> to vector<24x256xf32>
    %209 = arith.mulf %174, %208 : vector<24x256xf32>
    %210 = arith.addf %207, %209 : vector<24x256xf32>
    %c255_i32_68 = arith.constant 255 : i32
    %211 = tpu.dynamic_rotate %174 by %c255_i32_68 dim 1 : vector<24x256xf32>, i32 -> vector<24x256xf32>
    %cst_69 = arith.constant 0.000000e+00 : f32
    %212 = vector.shape_cast %43 : vector<1x256xi1> to vector<1x256xi1>
    %213 = vector.broadcast %212 : vector<1x256xi1> to vector<24x256xi1>
    %214 = vector.broadcast %cst_69 : f32 to vector<24x256xf32>
    %215 = arith.select %213, %211, %214 : vector<24x256xi1>, vector<24x256xf32>
    %216 = vector.broadcast %15 : vector<24x1xf32> to vector<24x256xf32>
    %217 = arith.mulf %215, %216 : vector<24x256xf32>
    %218 = arith.addf %210, %217 : vector<24x256xf32>
    %c240_i32_70 = arith.constant 240 : i32
    %219 = tpu.dynamic_rotate %174 by %c240_i32_70 dim 1 : vector<24x256xf32>, i32 -> vector<24x256xf32>
    %cst_71 = arith.constant 0.000000e+00 : f32
    %220 = vector.shape_cast %39 : vector<1x256xi1> to vector<1x256xi1>
    %221 = vector.broadcast %220 : vector<1x256xi1> to vector<24x256xi1>
    %222 = vector.broadcast %cst_71 : f32 to vector<24x256xf32>
    %223 = arith.select %221, %219, %222 : vector<24x256xi1>, vector<24x256xf32>
    %c1_i32_72 = arith.constant 1 : i32
    %224 = tpu.dynamic_rotate %223 by %c1_i32_72 dim 1 : vector<24x256xf32>, i32 -> vector<24x256xf32>
    %cst_73 = arith.constant 0.000000e+00 : f32
    %225 = vector.shape_cast %41 : vector<1x256xi1> to vector<1x256xi1>
    %226 = vector.broadcast %225 : vector<1x256xi1> to vector<24x256xi1>
    %227 = vector.broadcast %cst_73 : f32 to vector<24x256xf32>
    %228 = arith.select %226, %224, %227 : vector<24x256xi1>, vector<24x256xf32>
    %229 = vector.broadcast %16 : vector<24x1xf32> to vector<24x256xf32>
    %230 = arith.mulf %228, %229 : vector<24x256xf32>
    %231 = arith.addf %218, %230 : vector<24x256xf32>
    %232 = vector.broadcast %17 : vector<24x1xf32> to vector<24x256xf32>
    %233 = arith.mulf %223, %232 : vector<24x256xf32>
    %234 = arith.addf %231, %233 : vector<24x256xf32>
    %c255_i32_74 = arith.constant 255 : i32
    %235 = tpu.dynamic_rotate %223 by %c255_i32_74 dim 1 : vector<24x256xf32>, i32 -> vector<24x256xf32>
    %cst_75 = arith.constant 0.000000e+00 : f32
    %236 = vector.shape_cast %43 : vector<1x256xi1> to vector<1x256xi1>
    %237 = vector.broadcast %236 : vector<1x256xi1> to vector<24x256xi1>
    %238 = vector.broadcast %cst_75 : f32 to vector<24x256xf32>
    %239 = arith.select %237, %235, %238 : vector<24x256xi1>, vector<24x256xf32>
    %240 = vector.broadcast %18 : vector<24x1xf32> to vector<24x256xf32>
    %241 = arith.mulf %239, %240 : vector<24x256xf32>
    %242 = arith.addf %234, %241 : vector<24x256xf32>
    %243 = vector.broadcast %3 : vector<24x1xf32> to vector<24x256xf32>
    %244 = arith.addf %242, %243 : vector<24x256xf32>
    %245 = arith.negf %244 : vector<24x256xf32>
    %246 = math.exp %245 : vector<24x256xf32>
    %cst_76 = arith.constant 1.000000e+00 : f32
    %247 = vector.broadcast %cst_76 : f32 to vector<24x256xf32>
    %248 = arith.addf %247, %246 : vector<24x256xf32>
    %249 = arith.divf %247, %248 : vector<24x256xf32>
    %250 = arith.mulf %244, %249 : vector<24x256xf32>
    %cst_77 = arith.constant dense<0.000000e+00> : vector<24xf32>
    %251 = vector.multi_reduction <add>, %250, %cst_77 [1] : vector<24x256xf32> to vector<24xf32>
    %252 = vector.shape_cast %251 : vector<24xf32> to vector<24x1xf32>
    %cst_78 = arith.constant 2.560000e+02 : f32
    %253 = vector.broadcast %cst_78 : f32 to vector<24x1xf32>
    %254 = arith.divf %252, %253 : vector<24x1xf32>
    %255 = arith.mulf %254, %4 : vector<24x1xf32>
    %cst_79 = arith.constant dense<0.000000e+00> : vector<1xf32>
    %256 = vector.multi_reduction <add>, %255, %cst_79 [0] : vector<24x1xf32> to vector<1xf32>
    %257 = vector.shape_cast %256 : vector<1xf32> to vector<1x1xf32>
    %258 = arith.addf %257, %5 : vector<1x1xf32>
    %259 = arith.negf %258 : vector<1x1xf32>
    %260 = math.exp %259 : vector<1x1xf32>
    %cst_80 = arith.constant 1.000000e+00 : f32
    %261 = vector.broadcast %cst_80 : f32 to vector<1x1xf32>
    %262 = arith.addf %261, %260 : vector<1x1xf32>
    %263 = arith.divf %261, %262 : vector<1x1xf32>
    %264 = arith.mulf %258, %263 : vector<1x1xf32>
    %265 = vector.broadcast %264 : vector<1x1xf32> to vector<24x1xf32>
    %266 = arith.mulf %6, %265 : vector<24x1xf32>
    %cst_81 = arith.constant dense<0.000000e+00> : vector<24xf32>
    %267 = vector.multi_reduction <add>, %266, %cst_81 [1] : vector<24x1xf32> to vector<24xf32>
    %268 = vector.shape_cast %267 : vector<24xf32> to vector<24x1xf32>
    %269 = arith.addf %268, %7 : vector<24x1xf32>
    %270 = arith.negf %269 : vector<24x1xf32>
    %271 = math.exp %270 : vector<24x1xf32>
    %cst_82 = arith.constant 1.000000e+00 : f32
    %272 = vector.broadcast %cst_82 : f32 to vector<24x1xf32>
    %273 = arith.addf %272, %271 : vector<24x1xf32>
    %274 = arith.divf %272, %273 : vector<24x1xf32>
    %275 = vector.broadcast %274 : vector<24x1xf32> to vector<24x256xf32>
    %276 = arith.mulf %250, %275 : vector<24x256xf32>
    %cst_83 = arith.constant dense<0.000000e+00> : vector<4x256xf32>
    %277 = tpu.matmul %8, %276, %cst_83 {dimension_numbers = #tpu.dot_dimension_numbers<[1], [0], [0], [1], [0, 0, 1, 1], [], []>} : vector<4x24xf32>, vector<24x256xf32>, vector<4x256xf32> -> vector<4x256xf32>
    %278 = vector.broadcast %9 : vector<4x1xf32> to vector<4x256xf32>
    %279 = arith.addf %277, %278 : vector<4x256xf32>
    %280 = arith.addf %279, %165 : vector<4x256xf32>
    %c1_84 = arith.constant 1 : index
    %c0_85 = arith.constant 0 : index
    %c0_86 = arith.constant 0 : index
    %281 = vector.load %arg12[%c1_84, %c0_85, %c0_86] : memref<2x4x256xf32, #tpu.memory_space<vmem>>, vector<1x4x256xf32>
    %282 = vector.shape_cast %281 : vector<1x4x256xf32> to vector<4x256xf32>
    %283 = vector.shape_cast %280 : vector<4x256xf32> to vector<1x4x256xf32>
    tpu.vector_store %arg12[%c1_84, %c0_85, %c0_86], %283 {strides = array<i32>} : memref<2x4x256xf32, #tpu.memory_space<vmem>>, vector<1x4x256xf32>,
    return
  }
  func.func @transform_0(%arg0: i32) -> (i32, i32, i32) {
    %c0_i32 = arith.constant 0 : i32
    %c0_i32_0 = arith.constant 0 : i32
    %c0_i32_1 = arith.constant 0 : i32
    return %arg0, %c0_i32, %c0_i32_0 : i32, i32, i32
  }
  func.func @transform_1(%arg0: i32) -> (i32, i32) {
    %c0_i32 = arith.constant 0 : i32
    %c0_i32_0 = arith.constant 0 : i32
    %c0_i32_1 = arith.constant 0 : i32
    return %c0_i32, %c0_i32_0 : i32, i32
  }
  func.func @transform_2(%arg0: i32) -> (i32, i32) {
    %c0_i32 = arith.constant 0 : i32
    %c0_i32_0 = arith.constant 0 : i32
    %c0_i32_1 = arith.constant 0 : i32
    return %c0_i32, %c0_i32_0 : i32, i32
  }
  func.func @transform_3(%arg0: i32) -> (i32, i32) {
    %c0_i32 = arith.constant 0 : i32
    %c0_i32_0 = arith.constant 0 : i32
    %c0_i32_1 = arith.constant 0 : i32
    return %c0_i32, %c0_i32_0 : i32, i32
  }
  func.func @transform_4(%arg0: i32) -> (i32, i32) {
    %c0_i32 = arith.constant 0 : i32
    %c0_i32_0 = arith.constant 0 : i32
    %c0_i32_1 = arith.constant 0 : i32
    return %c0_i32, %c0_i32_0 : i32, i32
  }
  func.func @transform_5(%arg0: i32) -> (i32, i32) {
    %c0_i32 = arith.constant 0 : i32
    %c0_i32_0 = arith.constant 0 : i32
    %c0_i32_1 = arith.constant 0 : i32
    return %c0_i32, %c0_i32_0 : i32, i32
  }
  func.func @transform_6(%arg0: i32) -> (i32, i32) {
    %c0_i32 = arith.constant 0 : i32
    %c0_i32_0 = arith.constant 0 : i32
    %c0_i32_1 = arith.constant 0 : i32
    return %c0_i32, %c0_i32_0 : i32, i32
  }
  func.func @transform_7(%arg0: i32) -> (i32, i32) {
    %c0_i32 = arith.constant 0 : i32
    %c0_i32_0 = arith.constant 0 : i32
    %c0_i32_1 = arith.constant 0 : i32
    return %c0_i32, %c0_i32_0 : i32, i32
  }
  func.func @transform_8(%arg0: i32) -> (i32, i32) {
    %c0_i32 = arith.constant 0 : i32
    %c0_i32_0 = arith.constant 0 : i32
    %c0_i32_1 = arith.constant 0 : i32
    return %c0_i32, %c0_i32_0 : i32, i32
  }
  func.func @transform_9(%arg0: i32) -> (i32, i32) {
    %c0_i32 = arith.constant 0 : i32
    %c0_i32_0 = arith.constant 0 : i32
    %c0_i32_1 = arith.constant 0 : i32
    return %c0_i32, %c0_i32_0 : i32, i32
  }
  func.func @transform_10(%arg0: i32) -> (i32, i32) {
    %c0_i32 = arith.constant 0 : i32
    %c0_i32_0 = arith.constant 0 : i32
    %c0_i32_1 = arith.constant 0 : i32
    return %c0_i32, %c0_i32_0 : i32, i32
  }
  func.func @transform_11(%arg0: i32) -> (i32, i32, i32) {
    %c0_i32 = arith.constant 0 : i32
    %c0_i32_0 = arith.constant 0 : i32
    %c0_i32_1 = arith.constant 0 : i32
    return %arg0, %c0_i32, %c0_i32_0 : i32, i32, i32
  }
}

</mosaic_0001>

<llo_original>
// kernel: tpu_custom_call.1
$region0: #{tpu_custom_call.1}
  #allocation0 [shape = 'u32[]', space=smem, size = 0x4, offset = 0x4, fixed_abs, tag = 'smem constant byte address 0x4 - core index']
  #allocation1 [shape = 'u32[72,128]{1,0:T(1,128)}', space=vmem, size = 0x9000, scoped, tag = 'internal scratch']
  #allocation2 [shape = 'f32[1,1]{1,0:T(1,128)S(1)}', space=vmem, size = 0x200, scoped, tag = 'scoped memory for tpu_custom_call.1']
  %s0 = inlined_call_operand.vmem [shape: f32[2,4,256], index: 0, kind: input, shape index: {}]
  %s1 = inlined_call_operand.vmem [shape: f32[24,4], index: 1, kind: input, shape index: {}]
  %s2 = inlined_call_operand.vmem [shape: f32[24,1], index: 2, kind: input, shape index: {}]
  %s3 = inlined_call_operand.vmem [shape: f32[24,9], index: 3, kind: input, shape index: {}]
  %s4 = inlined_call_operand.vmem [shape: f32[24,1], index: 4, kind: input, shape index: {}]
  %s5 = inlined_call_operand.vmem [shape: f32[24,1], index: 5, kind: input, shape index: {}]
  %s6 = inlined_call_operand.<no memory space> [shape: f32[1,1], index: 6, kind: input, shape index: {}]
  %s7 = inlined_call_operand.vmem [shape: f32[24,1], index: 7, kind: input, shape index: {}]
  %s8 = inlined_call_operand.vmem [shape: f32[24,1], index: 8, kind: input, shape index: {}]
  %s9 = inlined_call_operand.vmem [shape: f32[4,24], index: 9, kind: input, shape index: {}]
  %s10 = inlined_call_operand.vmem [shape: f32[4,1], index: 10, kind: input, shape index: {}]
  %s11 = inlined_call_operand.hbm [shape: f32[2,4,256], index: 11, kind: output, shape index: {}]
  %s12 = sld [smem:[#allocation0]]
  $region54: #{tpu_custom_call.1} parent=0
    _
  %s14 = ssub.s32 1, %s12
  %s15 = scalar_select 0, %s14, %s12
  %v16 = vstv %s6
  %17 = vst [vmem:[#allocation2] sm:$0x1] %v16
  $region1: #{tpu_custom_call.1} parent=0
    #allocation3 [shape = 'u8[8192]{0}', space=vmem, size = 0x2000, scoped, tag = 'output window, operand 0, single buffered']
    #allocation4 [shape = 's32[1]{0}', space=sflag, size = 0x4, scoped, tag = 'scoped memory for tpu_custom_call.1']
    %18 = vsyncpa [#allocation4], 0
    // Predicated region
    $region2: #{tpu_custom_call.1} parent=1 // pred_check
      _
    $region3: #{tpu_custom_call.1} parent=1 // pred_check_branch
      %20 = sbr.rel (0) target = $region5
    $region4: #{tpu_custom_call.1} parent=1 // pred_region
      _
    $region5: #{tpu_custom_call.1} parent=1 // pred_fallthru
      _
    // Predicated region
    $region6: #{tpu_custom_call.1} parent=1 // pred_check
      _
    $region7: #{tpu_custom_call.1} parent=1 // pred_check_branch
      %22 = sbr.rel (0) target = $region9
    $region8: #{tpu_custom_call.1} parent=1 // pred_region
      _
    $region9: #{tpu_custom_call.1} parent=1 // pred_fallthru
      _
    // Predicated region
    $region10: #{tpu_custom_call.1} parent=1 // pred_check
      _
    $region11: #{tpu_custom_call.1} parent=1 // pred_check_branch
      %24 = sbr.rel (0) target = $region13
    $region12: #{tpu_custom_call.1} parent=1 // pred_region
      _
    $region13: #{tpu_custom_call.1} parent=1 // pred_fallthru
      _
    // Predicated region
    $region14: #{tpu_custom_call.1} parent=1 // pred_check
      _
    $region15: #{tpu_custom_call.1} parent=1 // pred_check_branch
      %26 = sbr.rel (0) target = $region17
    $region16: #{tpu_custom_call.1} parent=1 // pred_region
      _
    $region17: #{tpu_custom_call.1} parent=1 // pred_fallthru
      _
    // Predicated region
    $region18: #{tpu_custom_call.1} parent=1 // pred_check
      _
    $region19: #{tpu_custom_call.1} parent=1 // pred_check_branch
      %28 = sbr.rel (0) target = $region21
    $region20: #{tpu_custom_call.1} parent=1 // pred_region
      _
    $region21: #{tpu_custom_call.1} parent=1 // pred_fallthru
      _
    // Predicated region
    $region22: #{tpu_custom_call.1} parent=1 // pred_check
      _
    $region23: #{tpu_custom_call.1} parent=1 // pred_check_branch
      %30 = sbr.rel (0) target = $region25
    $region24: #{tpu_custom_call.1} parent=1 // pred_region
      _
    $region25: #{tpu_custom_call.1} parent=1 // pred_fallthru
      _
    // Predicated region
    $region26: #{tpu_custom_call.1} parent=1 // pred_check
      _
    $region27: #{tpu_custom_call.1} parent=1 // pred_check_branch
      %32 = sbr.rel (0) target = $region29
    $region28: #{tpu_custom_call.1} parent=1 // pred_region
      _
    $region29: #{tpu_custom_call.1} parent=1 // pred_fallthru
      _
    // Predicated region
    $region30: #{tpu_custom_call.1} parent=1 // pred_check
      _
    $region31: #{tpu_custom_call.1} parent=1 // pred_check_branch
      %34 = sbr.rel (0) target = $region33
    $region32: #{tpu_custom_call.1} parent=1 // pred_region
      _
    $region33: #{tpu_custom_call.1} parent=1 // pred_fallthru
      _
    // Predicated region
    $region34: #{tpu_custom_call.1} parent=1 // pred_check
      _
    $region35: #{tpu_custom_call.1} parent=1 // pred_check_branch
      %36 = sbr.rel (0) target = $region37
    $region36: #{tpu_custom_call.1} parent=1 // pred_region
      _
    $region37: #{tpu_custom_call.1} parent=1 // pred_fallthru
      _
    // Predicated region
    $region38: #{tpu_custom_call.1} parent=1 // pred_check
      _
    $region39: #{tpu_custom_call.1} parent=1 // pred_check_branch
      %38 = sbr.rel (0) target = $region41
    $region40: #{tpu_custom_call.1} parent=1 // pred_region
      _
    $region41: #{tpu_custom_call.1} parent=1 // pred_fallthru
      _
    // Predicated region
    $region42: #{tpu_custom_call.1} parent=1 // pred_check
      _
    $region43: #{tpu_custom_call.1} parent=1 // pred_check_branch
      %40 = sbr.rel (0) target = $region45
    $region44: #{tpu_custom_call.1} parent=1 // pred_region
      _
    $region45: #{tpu_custom_call.1} parent=1 // pred_fallthru
      _
    %v41 = vld [vmem:[%s1] sm:$0xff]
    %v42 = vld [vmem:[%s1 + $0x8] sm:$0xff]
    %v43 = vld [vmem:[%s1 + $0x10] sm:$0xff]
    %v44 = vld [vmem:[%s2] sm:$0xff]
    %v45 = vld [vmem:[%s2 + $0x8] sm:$0xff]
    %v46 = vld [vmem:[%s2 + $0x10] sm:$0xff]
    %v47 = vld [vmem:[%s3] sm:$0xff]
    %v48 = vld [vmem:[%s3 + $0x8] sm:$0xff]
    %v49 = vld [vmem:[%s3 + $0x10] sm:$0xff]
    %v50 = vld [vmem:[%s4] sm:$0xff]
    %v51 = vld [vmem:[%s4 + $0x8] sm:$0xff]
    %v52 = vld [vmem:[%s4 + $0x10] sm:$0xff]
    %v53 = vld [vmem:[%s5] sm:$0xff]
    %v54 = vld [vmem:[%s5 + $0x8] sm:$0xff]
    %v55 = vld [vmem:[%s5 + $0x10] sm:$0xff]
    %v56 = vld [vmem:[#allocation2] sm:$0x1]
    %v57 = vld [vmem:[%s7] sm:$0xff]
    %v58 = vld [vmem:[%s7 + $0x8] sm:$0xff]
    %v59 = vld [vmem:[%s7 + $0x10] sm:$0xff]
    %v60 = vld [vmem:[%s8] sm:$0xff]
    %v61 = vld [vmem:[%s8 + $0x8] sm:$0xff]
    %v62 = vld [vmem:[%s8 + $0x10] sm:$0xff]
    %v63 = vld [vmem:[%s9] sm:$0xf]
    %v64 = vld [vmem:[%s10] sm:$0xf]
    %v65 = vlaneseq
    %v66 = vand.u32 %v65, 127
    %v67 = vadd.s32 %v66, 128
    %vm68 = vcmp.lt.s32.totalorder %v66, 0
    %v69 = vsub.s32 0, %v66
    %v70 = vsel %vm68, %v69, %v66
    %v71 = vshrl.u32 %v70, 4
    %v72 = vand.u32 %v70, 15
    %v73 = vsub.s32 0, %v72
    %v74 = vsel %vm68, %v73, %v72
    %vm75 = vcmp.lt.s32.totalorder %v67, 0
    %v76 = vsub.s32 0, %v67
    %v77 = vsel %vm75, %v76, %v67
    %v78 = vshrl.u32 %v77, 4
    %v79 = vand.u32 %v77, 15
    %v80 = vsub.s32 0, %v79
    %v81 = vsel %vm75, %v80, %v79
    %vm82 = vcmp.ne.s32.totalorder %v74, 0
    %vm83 = vcmp.ne.s32.totalorder %v81, 0
    %vm84 = vcmp.lt.s32.totalorder %v74, 0
    %vm85 = vcmp.lt.s32.totalorder %v81, 0
    %vm86 = vmand %vm84, %vm82
    %vm87 = vmand %vm85, %vm83
    %v88 = vadd.s32 %v74, 16
    %v89 = vadd.s32 %v81, 16
    %v90 = vsel %vm86, %v88, %v74
    %v91 = vsel %vm87, %v89, %v81
    %vm92 = vcmp.ge.s32.totalorder %v66, 16
    %vm93 = vcmp.ge.s32.totalorder %v67, 16
    %vm94 = vcmp.lt.s32.totalorder %v66, 240
    %vm95 = vcmp.lt.s32.totalorder %v67, 240
    %vm96 = vcmp.ge.s32.totalorder %v90, 1
    %vm97 = vcmp.ge.s32.totalorder %v91, 1
    %vm98 = vcmp.lt.s32.totalorder %v90, 15
    %vm99 = vcmp.lt.s32.totalorder %v91, 15
    %v100 = vld [vmem:[%s0] sm:$0xff]
    %102 = vset.pattern.permute.xlu0 0
    %103 = vperm.xlu0 %102, %v44
    %v104 = vpop.permute.xlu0 %103
    %107 = vset.pattern.permute.xlu0 0
    %108 = vperm.xlu0 %107, %v45
    %v109 = vpop.permute.xlu0 %108
    %112 = vset.pattern.permute.xlu0 0
    %113 = vperm.xlu0 %112, %v46
    %v114 = vpop.permute.xlu0 %113
    %117 = vst [vmem:[#allocation1] ss:$2 sm:$0xff] %v100
    %v118 = vld.sshfl [vmem:[#allocation1] sm:$0xff pattern:$0x75316420]
    %v119 = vld.sshfl [vmem:[#allocation1 + $0x8] sm:$0xff pattern:$0x75316420]
    %vm120 = vcmask 31744
    %v122 = vsel %vm120, %v41, 0
    %v125 = vsel %vm120, %v42, 0
    %v128 = vsel %vm120, %v43, 0
    %vm130 = vcmask 1043456
    %v131 = vsel %vm130, %v118, 0
    %v133 = vsel %vm130, %v119, 0
    %135 = vmatpush.msra.mxu0 0.0
    %136 = vmatpush.msra.mxu0 0.0
    %137 = vmatpush.msra.mxu0 0.0
    %138 = vmatpush.msra.mxu0 0.0
    %139 = vmatpush.msra.mxu0 0.0
    %140 = vmatpush.msra.mxu0 0.0
    %141 = vmatpush.msra.mxu0 0.0
    %142 = vmatpush.msra.mxu0 0.0
    %143 = vmatpush.msra.mxu0 0.0
    %144 = vmatpush.msra.mxu0 0.0
    %145 = vmatpush.msra.mxu0 0.0
    %146 = vmatpush.msra.mxu0 0.0
    %147 = vmatpush.msra.mxu0 0.0
    %148 = vmatpush.msra.mxu0 0.0
    %149 = vmatpush.msra.mxu0 0.0
    %150 = vmatpush.msra.mxu0 %v131
    %151 = vmatmul.f32.gmra.mxu0 %v122
    %v152 = vpop.f32.mrf.mxu0
    %v153 = vadd.f32 %v104, %v152
    %154 = vmatmul.f32.gmra.mxu0 %v125
    %v155 = vpop.f32.mrf.mxu0
    %v156 = vadd.f32 %v109, %v155
    %157 = vmatmul.f32.gmra.mxu0 %v128
    %v158 = vpop.f32.mrf.mxu0
    %v159 = vadd.f32 %v114, %v158
    %160 = vdwg.mxu0
    %161 = vmatpush.msra.mxu0 0.0
    %162 = vmatpush.msra.mxu0 0.0
    %163 = vmatpush.msra.mxu0 0.0
    %164 = vmatpush.msra.mxu0 0.0
    %165 = vmatpush.msra.mxu0 0.0
    %166 = vmatpush.msra.mxu0 0.0
    %167 = vmatpush.msra.mxu0 0.0
    %168 = vmatpush.msra.mxu0 0.0
    %169 = vmatpush.msra.mxu0 0.0
    %170 = vmatpush.msra.mxu0 0.0
    %171 = vmatpush.msra.mxu0 0.0
    %172 = vmatpush.msra.mxu0 0.0
    %173 = vmatpush.msra.mxu0 0.0
    %174 = vmatpush.msra.mxu0 0.0
    %175 = vmatpush.msra.mxu0 0.0
    %176 = vmatpush.msra.mxu0 %v133
    %177 = vmatmul.f32.gmra.mxu0 %v122
    %v178 = vpop.f32.mrf.mxu0
    %v179 = vadd.f32 %v104, %v178
    %180 = vmatmul.f32.gmra.mxu0 %v125
    %v181 = vpop.f32.mrf.mxu0
    %v182 = vadd.f32 %v109, %v181
    %183 = vmatmul.f32.gmra.mxu0 %v128
    %v184 = vpop.f32.mrf.mxu0
    %v185 = vadd.f32 %v114, %v184
    %186 = vdwg.mxu0
    %v187 = vxor.u32 %v153, 2147483648
    %v188 = vxor.u32 %v179, 2147483648
    %v189 = vxor.u32 %v156, 2147483648
    %v190 = vxor.u32 %v182, 2147483648
    %v191 = vxor.u32 %v159, 2147483648
    %v192 = vxor.u32 %v185, 2147483648
    %v193 = vmul.f32 %v187, 1.442695
    %v194 = vpow.pop %v193
    %v195 = vmul.f32 %v188, 1.442695
    %v196 = vpow.pop %v195
    %v197 = vmul.f32 %v189, 1.442695
    %v198 = vpow.pop %v197
    %v199 = vmul.f32 %v190, 1.442695
    %v200 = vpow.pop %v199
    %v201 = vmul.f32 %v191, 1.442695
    %v202 = vpow.pop %v201
    %v203 = vmul.f32 %v192, 1.442695
    %v204 = vpow.pop %v203
    %v205 = vadd.f32 %v194, 1.0
    %v206 = vadd.f32 %v196, 1.0
    %v207 = vadd.f32 %v198, 1.0
    %v208 = vadd.f32 %v200, 1.0
    %v209 = vadd.f32 %v202, 1.0
    %v210 = vadd.f32 %v204, 1.0
    %v211 = vrcp.pop %v205
    %v212 = vmul.f32 %v205, %v211
    %v213 = vsub.f32 1.0, %v212
    %v214 = vmul.f32 %v211, %v213
    %v215 = vadd.f32 %v211, %v214
    %vm216 = vweird.f32 %v205
    %vm217 = vweird.f32 %v211
    %vm218 = vmor %vm216, %vm217
    %v219 = vsel %vm218, %v211, %v215
    %v220 = vand.u32 2147483647, %v205
    %vm221 = vcmp.eq.f32.partialorder %v220, 8.507059e+37
    %v222 = vand.u32 %v205, 2147483648
    %v223 = vor.u32 1.1754944e-38, %v222
    %v224 = vsel %vm221, %v223, %v219
    %v225 = vmul.f32 1.0, %v224
    %v226 = vrcp.pop %v206
    %v227 = vmul.f32 %v206, %v226
    %v228 = vsub.f32 1.0, %v227
    %v229 = vmul.f32 %v226, %v228
    %v230 = vadd.f32 %v226, %v229
    %vm231 = vweird.f32 %v206
    %vm232 = vweird.f32 %v226
    %vm233 = vmor %vm231, %vm232
    %v234 = vsel %vm233, %v226, %v230
    %v235 = vand.u32 2147483647, %v206
    %vm236 = vcmp.eq.f32.partialorder %v235, 8.507059e+37
    %v237 = vand.u32 %v206, 2147483648
    %v238 = vor.u32 1.1754944e-38, %v237
    %v239 = vsel %vm236, %v238, %v234
    %v240 = vmul.f32 1.0, %v239
    %v241 = vrcp.pop %v207
    %v242 = vmul.f32 %v207, %v241
    %v243 = vsub.f32 1.0, %v242
    %v244 = vmul.f32 %v241, %v243
    %v245 = vadd.f32 %v241, %v244
    %vm246 = vweird.f32 %v207
    %vm247 = vweird.f32 %v241
    %vm248 = vmor %vm246, %vm247
    %v249 = vsel %vm248, %v241, %v245
    %v250 = vand.u32 2147483647, %v207
    %vm251 = vcmp.eq.f32.partialorder %v250, 8.507059e+37
    %v252 = vand.u32 %v207, 2147483648
    %v253 = vor.u32 1.1754944e-38, %v252
    %v254 = vsel %vm251, %v253, %v249
    %v255 = vmul.f32 1.0, %v254
    %v256 = vrcp.pop %v208
    %v257 = vmul.f32 %v208, %v256
    %v258 = vsub.f32 1.0, %v257
    %v259 = vmul.f32 %v256, %v258
    %v260 = vadd.f32 %v256, %v259
    %vm261 = vweird.f32 %v208
    %vm262 = vweird.f32 %v256
    %vm263 = vmor %vm261, %vm262
    %v264 = vsel %vm263, %v256, %v260
    %v265 = vand.u32 2147483647, %v208
    %vm266 = vcmp.eq.f32.partialorder %v265, 8.507059e+37
    %v267 = vand.u32 %v208, 2147483648
    %v268 = vor.u32 1.1754944e-38, %v267
    %v269 = vsel %vm266, %v268, %v264
    %v270 = vmul.f32 1.0, %v269
    %v271 = vrcp.pop %v209
    %v272 = vmul.f32 %v209, %v271
    %v273 = vsub.f32 1.0, %v272
    %v274 = vmul.f32 %v271, %v273
    %v275 = vadd.f32 %v271, %v274
    %vm276 = vweird.f32 %v209
    %vm277 = vweird.f32 %v271
    %vm278 = vmor %vm276, %vm277
    %v279 = vsel %vm278, %v271, %v275
    %v280 = vand.u32 2147483647, %v209
    %vm281 = vcmp.eq.f32.partialorder %v280, 8.507059e+37
    %v282 = vand.u32 %v209, 2147483648
    %v283 = vor.u32 1.1754944e-38, %v282
    %v284 = vsel %vm281, %v283, %v279
    %v285 = vmul.f32 1.0, %v284
    %v286 = vrcp.pop %v210
    %v287 = vmul.f32 %v210, %v286
    %v288 = vsub.f32 1.0, %v287
    %v289 = vmul.f32 %v286, %v288
    %v290 = vadd.f32 %v286, %v289
    %vm291 = vweird.f32 %v210
    %vm292 = vweird.f32 %v286
    %vm293 = vmor %vm291, %vm292
    %v294 = vsel %vm293, %v286, %v290
    %v295 = vand.u32 2147483647, %v210
    %vm296 = vcmp.eq.f32.partialorder %v295, 8.507059e+37
    %v297 = vand.u32 %v210, 2147483648
    %v298 = vor.u32 1.1754944e-38, %v297
    %v299 = vsel %vm296, %v298, %v294
    %v300 = vmul.f32 1.0, %v299
    %v301 = vmul.f32 %v153, %v225
    %v302 = vmul.f32 %v179, %v240
    %v303 = vmul.f32 %v156, %v255
    %v304 = vmul.f32 %v182, %v270
    %v305 = vmul.f32 %v159, %v285
    %v306 = vmul.f32 %v185, %v300
    %307 = vrot.lane.b32.xlu0 %v301, 16
    %v308 = vpop.permute.xlu0 %307
    %309 = vrot.lane.b32.xlu0 %v303, 16
    %v310 = vpop.permute.xlu0 %309
    %311 = vrot.lane.b32.xlu0 %v305, 16
    %v312 = vpop.permute.xlu0 %311
    %313 = vrot.lane.b32.xlu0 %v302, 16
    %v314 = vpop.permute.xlu0 %313
    %315 = vrot.lane.b32.xlu0 %v304, 16
    %v316 = vpop.permute.xlu0 %315
    %317 = vrot.lane.b32.xlu0 %v306, 16
    %v318 = vpop.permute.xlu0 %317
    %vm319 = vcmp.lt.s32.totalorder %v66, 16
    %v320 = vsel %vm319, %v308, %v314
    %v321 = vsel %vm319, %v310, %v316
    %v322 = vsel %vm319, %v312, %v318
    %v323 = vsel %vm319, %v314, %v308
    %v324 = vsel %vm319, %v316, %v310
    %v325 = vsel %vm319, %v318, %v312
    %v326 = vsel %vm92, 1, 0
    %v327 = vsel %vm93, 1, 0
    %vm328 = vcmp.eq.s32.totalorder %v326, 1
    %vm329 = vcmp.eq.s32.totalorder %v327, 1
    %v330 = vsel %vm328, %v323, 0.0
    %v331 = vsel %vm329, %v320, 0.0
    %v332 = vsel %vm328, %v324, 0.0
    %v333 = vsel %vm329, %v321, 0.0
    %v334 = vsel %vm328, %v325, 0.0
    %v335 = vsel %vm329, %v322, 0.0
    %336 = vrot.lane.b32.xlu0 %v330, 1
    %v337 = vpop.permute.xlu0 %336
    %338 = vrot.lane.b32.xlu0 %v332, 1
    %v339 = vpop.permute.xlu0 %338
    %340 = vrot.lane.b32.xlu0 %v334, 1
    %v341 = vpop.permute.xlu0 %340
    %342 = vrot.lane.b32.xlu0 %v331, 1
    %v343 = vpop.permute.xlu0 %342
    %344 = vrot.lane.b32.xlu0 %v333, 1
    %v345 = vpop.permute.xlu0 %344
    %346 = vrot.lane.b32.xlu0 %v335, 1
    %v347 = vpop.permute.xlu0 %346
    %vm348 = vcmp.lt.s32.totalorder %v66, 1
    %v349 = vsel %vm348, %v337, %v343
    %v350 = vsel %vm348, %v339, %v345
    %v351 = vsel %vm348, %v341, %v347
    %v352 = vsel %vm348, %v343, %v337
    %v353 = vsel %vm348, %v345, %v339
    %v354 = vsel %vm348, %v347, %v341
    %v355 = vsel %vm96, 1, 0
    %v356 = vsel %vm97, 1, 0
    %vm357 = vcmp.eq.s32.totalorder %v355, 1
    %vm358 = vcmp.eq.s32.totalorder %v356, 1
    %v359 = vsel %vm357, %v352, 0.0
    %v360 = vsel %vm358, %v349, 0.0
    %v361 = vsel %vm357, %v353, 0.0
    %v362 = vsel %vm358, %v350, 0.0
    %v363 = vsel %vm357, %v354, 0.0
    %v364 = vsel %vm358, %v351, 0.0
    %366 = vset.pattern.permute.xlu0 0
    %367 = vperm.xlu0 %366, %v47
    %v368 = vpop.permute.xlu0 %367
    %371 = vset.pattern.permute.xlu0 0
    %372 = vperm.xlu0 %371, %v48
    %v373 = vpop.permute.xlu0 %372
    %376 = vset.pattern.permute.xlu0 0
    %377 = vperm.xlu0 %376, %v49
    %v378 = vpop.permute.xlu0 %377
    %v380 = vmul.f32 %v359, %v368
    %v381 = vmul.f32 %v360, %v368
    %v382 = vmul.f32 %v361, %v373
    %v383 = vmul.f32 %v362, %v373
    %v384 = vmul.f32 %v363, %v378
    %v385 = vmul.f32 %v364, %v378
    %v386 = vadd.f32 %v380, 0.0
    %v387 = vadd.f32 %v381, 0.0
    %v388 = vadd.f32 %v382, 0.0
    %v389 = vadd.f32 %v383, 0.0
    %v390 = vadd.f32 %v384, 0.0
    %v391 = vadd.f32 %v385, 0.0
    %392 = vset.pattern.permute.xlu0 1
    %393 = vperm.xlu0 %392, %v47
    %v394 = vpop.permute.xlu0 %393
    %396 = vset.pattern.permute.xlu0 1
    %397 = vperm.xlu0 %396, %v48
    %v398 = vpop.permute.xlu0 %397
    %400 = vset.pattern.permute.xlu0 1
    %401 = vperm.xlu0 %400, %v49
    %v402 = vpop.permute.xlu0 %401
    %v404 = vmul.f32 %v330, %v394
    %v405 = vmul.f32 %v331, %v394
    %v406 = vmul.f32 %v332, %v398
    %v407 = vmul.f32 %v333, %v398
    %v408 = vmul.f32 %v334, %v402
    %v409 = vmul.f32 %v335, %v402
    %v410 = vadd.f32 %v386, %v404
    %v411 = vadd.f32 %v387, %v405
    %v412 = vadd.f32 %v388, %v406
    %v413 = vadd.f32 %v389, %v407
    %v414 = vadd.f32 %v390, %v408
    %v415 = vadd.f32 %v391, %v409
    %416 = vrot.lane.b32.xlu0 %v330, 127
    %v417 = vpop.permute.xlu0 %416
    %418 = vrot.lane.b32.xlu0 %v332, 127
    %v419 = vpop.permute.xlu0 %418
    %420 = vrot.lane.b32.xlu0 %v334, 127
    %v421 = vpop.permute.xlu0 %420
    %422 = vrot.lane.b32.xlu0 %v331, 127
    %v423 = vpop.permute.xlu0 %422
    %424 = vrot.lane.b32.xlu0 %v333, 127
    %v425 = vpop.permute.xlu0 %424
    %426 = vrot.lane.b32.xlu0 %v335, 127
    %v427 = vpop.permute.xlu0 %426
    %vm428 = vcmp.lt.s32.totalorder %v66, 127
    %v429 = vsel %vm428, %v417, %v423
    %v430 = vsel %vm428, %v419, %v425
    %v431 = vsel %vm428, %v421, %v427
    %v432 = vsel %vm428, %v423, %v417
    %v433 = vsel %vm428, %v425, %v419
    %v434 = vsel %vm428, %v427, %v421
    %v435 = vsel %vm98, 1, 0
    %v436 = vsel %vm99, 1, 0
    %vm437 = vcmp.eq.s32.totalorder %v435, 1
    %vm438 = vcmp.eq.s32.totalorder %v436, 1
    %v439 = vsel %vm437, %v429, 0.0
    %v440 = vsel %vm438, %v432, 0.0
    %v441 = vsel %vm437, %v430, 0.0
    %v442 = vsel %vm438, %v433, 0.0
    %v443 = vsel %vm437, %v431, 0.0
    %v444 = vsel %vm438, %v434, 0.0
    %445 = vset.pattern.permute.xlu0 2
    %446 = vperm.xlu0 %445, %v47
    %v447 = vpop.permute.xlu0 %446
    %449 = vset.pattern.permute.xlu0 2
    %450 = vperm.xlu0 %449, %v48
    %v451 = vpop.permute.xlu0 %450
    %453 = vset.pattern.permute.xlu0 2
    %454 = vperm.xlu0 %453, %v49
    %v455 = vpop.permute.xlu0 %454
    %v457 = vmul.f32 %v439, %v447
    %v458 = vmul.f32 %v440, %v447
    %v459 = vmul.f32 %v441, %v451
    %v460 = vmul.f32 %v442, %v451
    %v461 = vmul.f32 %v443, %v455
    %v462 = vmul.f32 %v444, %v455
    %v463 = vadd.f32 %v410, %v457
    %v464 = vadd.f32 %v411, %v458
    %v465 = vadd.f32 %v412, %v459
    %v466 = vadd.f32 %v413, %v460
    %v467 = vadd.f32 %v414, %v461
    %v468 = vadd.f32 %v415, %v462
    %469 = vrot.lane.b32.xlu0 %v301, 1
    %v470 = vpop.permute.xlu0 %469
    %471 = vrot.lane.b32.xlu0 %v303, 1
    %v472 = vpop.permute.xlu0 %471
    %473 = vrot.lane.b32.xlu0 %v305, 1
    %v474 = vpop.permute.xlu0 %473
    %475 = vrot.lane.b32.xlu0 %v302, 1
    %v476 = vpop.permute.xlu0 %475
    %477 = vrot.lane.b32.xlu0 %v304, 1
    %v478 = vpop.permute.xlu0 %477
    %479 = vrot.lane.b32.xlu0 %v306, 1
    %v480 = vpop.permute.xlu0 %479
    %v481 = vsel %vm348, %v470, %v476
    %v482 = vsel %vm348, %v472, %v478
    %v483 = vsel %vm348, %v474, %v480
    %v484 = vsel %vm348, %v476, %v470
    %v485 = vsel %vm348, %v478, %v472
    %v486 = vsel %vm348, %v480, %v474
    %v487 = vsel %vm357, %v484, 0.0
    %v488 = vsel %vm358, %v481, 0.0
    %v489 = vsel %vm357, %v485, 0.0
    %v490 = vsel %vm358, %v482, 0.0
    %v491 = vsel %vm357, %v486, 0.0
    %v492 = vsel %vm358, %v483, 0.0
    %493 = vset.pattern.permute.xlu0 3
    %494 = vperm.xlu0 %493, %v47
    %v495 = vpop.permute.xlu0 %494
    %497 = vset.pattern.permute.xlu0 3
    %498 = vperm.xlu0 %497, %v48
    %v499 = vpop.permute.xlu0 %498
    %501 = vset.pattern.permute.xlu0 3
    %502 = vperm.xlu0 %501, %v49
    %v503 = vpop.permute.xlu0 %502
    %v505 = vmul.f32 %v487, %v495
    %v506 = vmul.f32 %v488, %v495
    %v507 = vmul.f32 %v489, %v499
    %v508 = vmul.f32 %v490, %v499
    %v509 = vmul.f32 %v491, %v503
    %v510 = vmul.f32 %v492, %v503
    %v511 = vadd.f32 %v463, %v505
    %v512 = vadd.f32 %v464, %v506
    %v513 = vadd.f32 %v465, %v507
    %v514 = vadd.f32 %v466, %v508
    %v515 = vadd.f32 %v467, %v509
    %v516 = vadd.f32 %v468, %v510
    %517 = vset.pattern.permute.xlu0 4
    %518 = vperm.xlu0 %517, %v47
    %v519 = vpop.permute.xlu0 %518
    %521 = vset.pattern.permute.xlu0 4
    %522 = vperm.xlu0 %521, %v48
    %v523 = vpop.permute.xlu0 %522
    %525 = vset.pattern.permute.xlu0 4
    %526 = vperm.xlu0 %525, %v49
    %v527 = vpop.permute.xlu0 %526
    %v529 = vmul.f32 %v301, %v519
    %v530 = vmul.f32 %v302, %v519
    %v531 = vmul.f32 %v303, %v523
    %v532 = vmul.f32 %v304, %v523
    %v533 = vmul.f32 %v305, %v527
    %v534 = vmul.f32 %v306, %v527
    %v535 = vadd.f32 %v511, %v529
    %v536 = vadd.f32 %v512, %v530
    %v537 = vadd.f32 %v513, %v531
    %v538 = vadd.f32 %v514, %v532
    %v539 = vadd.f32 %v515, %v533
    %v540 = vadd.f32 %v516, %v534
    %541 = vrot.lane.b32.xlu0 %v301, 127
    %v542 = vpop.permute.xlu0 %541
    %543 = vrot.lane.b32.xlu0 %v303, 127
    %v544 = vpop.permute.xlu0 %543
    %545 = vrot.lane.b32.xlu0 %v305, 127
    %v546 = vpop.permute.xlu0 %545
    %547 = vrot.lane.b32.xlu0 %v302, 127
    %v548 = vpop.permute.xlu0 %547
    %549 = vrot.lane.b32.xlu0 %v304, 127
    %v550 = vpop.permute.xlu0 %549
    %551 = vrot.lane.b32.xlu0 %v306, 127
    %v552 = vpop.permute.xlu0 %551
    %v553 = vsel %vm428, %v542, %v548
    %v554 = vsel %vm428, %v544, %v550
    %v555 = vsel %vm428, %v546, %v552
    %v556 = vsel %vm428, %v548, %v542
    %v557 = vsel %vm428, %v550, %v544
    %v558 = vsel %vm428, %v552, %v546
    %v559 = vsel %vm437, %v553, 0.0
    %v560 = vsel %vm438, %v556, 0.0
    %v561 = vsel %vm437, %v554, 0.0
    %v562 = vsel %vm438, %v557, 0.0
    %v563 = vsel %vm437, %v555, 0.0
    %v564 = vsel %vm438, %v558, 0.0
    %565 = vset.pattern.permute.xlu0 5
    %566 = vperm.xlu0 %565, %v47
    %v567 = vpop.permute.xlu0 %566
    %569 = vset.pattern.permute.xlu0 5
    %570 = vperm.xlu0 %569, %v48
    %v571 = vpop.permute.xlu0 %570
    %573 = vset.pattern.permute.xlu0 5
    %574 = vperm.xlu0 %573, %v49
    %v575 = vpop.permute.xlu0 %574
    %v577 = vmul.f32 %v559, %v567
    %v578 = vmul.f32 %v560, %v567
    %v579 = vmul.f32 %v561, %v571
    %v580 = vmul.f32 %v562, %v571
    %v581 = vmul.f32 %v563, %v575
    %v582 = vmul.f32 %v564, %v575
    %v583 = vadd.f32 %v535, %v577
    %v584 = vadd.f32 %v536, %v578
    %v585 = vadd.f32 %v537, %v579
    %v586 = vadd.f32 %v538, %v580
    %v587 = vadd.f32 %v539, %v581
    %v588 = vadd.f32 %v540, %v582
    %589 = vrot.lane.b32.xlu0 %v301, 112
    %v590 = vpop.permute.xlu0 %589
    %591 = vrot.lane.b32.xlu0 %v303, 112
    %v592 = vpop.permute.xlu0 %591
    %593 = vrot.lane.b32.xlu0 %v305, 112
    %v594 = vpop.permute.xlu0 %593
    %595 = vrot.lane.b32.xlu0 %v302, 112
    %v596 = vpop.permute.xlu0 %595
    %597 = vrot.lane.b32.xlu0 %v304, 112
    %v598 = vpop.permute.xlu0 %597
    %599 = vrot.lane.b32.xlu0 %v306, 112
    %v600 = vpop.permute.xlu0 %599
    %vm601 = vcmp.lt.s32.totalorder %v66, 112
    %v602 = vsel %vm601, %v590, %v596
    %v603 = vsel %vm601, %v592, %v598
    %v604 = vsel %vm601, %v594, %v600
    %v605 = vsel %vm601, %v596, %v590
    %v606 = vsel %vm601, %v598, %v592
    %v607 = vsel %vm601, %v600, %v594
    %v608 = vsel %vm94, 1, 0
    %v609 = vsel %vm95, 1, 0
    %vm610 = vcmp.eq.s32.totalorder %v608, 1
    %vm611 = vcmp.eq.s32.totalorder %v609, 1
    %v612 = vsel %vm610, %v602, 0.0
    %v613 = vsel %vm611, %v605, 0.0
    %v614 = vsel %vm610, %v603, 0.0
    %v615 = vsel %vm611, %v606, 0.0
    %v616 = vsel %vm610, %v604, 0.0
    %v617 = vsel %vm611, %v607, 0.0
    %618 = vrot.lane.b32.xlu0 %v612, 1
    %v619 = vpop.permute.xlu0 %618
    %620 = vrot.lane.b32.xlu0 %v614, 1
    %v621 = vpop.permute.xlu0 %620
    %622 = vrot.lane.b32.xlu0 %v616, 1
    %v623 = vpop.permute.xlu0 %622
    %624 = vrot.lane.b32.xlu0 %v613, 1
    %v625 = vpop.permute.xlu0 %624
    %626 = vrot.lane.b32.xlu0 %v615, 1
    %v627 = vpop.permute.xlu0 %626
    %628 = vrot.lane.b32.xlu0 %v617, 1
    %v629 = vpop.permute.xlu0 %628
    %v630 = vsel %vm348, %v619, %v625
    %v631 = vsel %vm348, %v621, %v627
    %v632 = vsel %vm348, %v623, %v629
    %v633 = vsel %vm348, %v625, %v619
    %v634 = vsel %vm348, %v627, %v621
    %v635 = vsel %vm348, %v629, %v623
    %v636 = vsel %vm357, %v633, 0.0
    %v637 = vsel %vm358, %v630, 0.0
    %v638 = vsel %vm357, %v634, 0.0
    %v639 = vsel %vm358, %v631, 0.0
    %v640 = vsel %vm357, %v635, 0.0
    %v641 = vsel %vm358, %v632, 0.0
    %642 = vset.pattern.permute.xlu0 6
    %643 = vperm.xlu0 %642, %v47
    %v644 = vpop.permute.xlu0 %643
    %646 = vset.pattern.permute.xlu0 6
    %647 = vperm.xlu0 %646, %v48
    %v648 = vpop.permute.xlu0 %647
    %650 = vset.pattern.permute.xlu0 6
    %651 = vperm.xlu0 %650, %v49
    %v652 = vpop.permute.xlu0 %651
    %v654 = vmul.f32 %v636, %v644
    %v655 = vmul.f32 %v637, %v644
    %v656 = vmul.f32 %v638, %v648
    %v657 = vmul.f32 %v639, %v648
    %v658 = vmul.f32 %v640, %v652
    %v659 = vmul.f32 %v641, %v652
    %v660 = vadd.f32 %v583, %v654
    %v661 = vadd.f32 %v584, %v655
    %v662 = vadd.f32 %v585, %v656
    %v663 = vadd.f32 %v586, %v657
    %v664 = vadd.f32 %v587, %v658
    %v665 = vadd.f32 %v588, %v659
    %666 = vset.pattern.permute.xlu0 7
    %667 = vperm.xlu0 %666, %v47
    %v668 = vpop.permute.xlu0 %667
    %670 = vset.pattern.permute.xlu0 7
    %671 = vperm.xlu0 %670, %v48
    %v672 = vpop.permute.xlu0 %671
    %674 = vset.pattern.permute.xlu0 7
    %675 = vperm.xlu0 %674, %v49
    %v676 = vpop.permute.xlu0 %675
    %v678 = vmul.f32 %v612, %v668
    %v679 = vmul.f32 %v613, %v668
    %v680 = vmul.f32 %v614, %v672
    %v681 = vmul.f32 %v615, %v672
    %v682 = vmul.f32 %v616, %v676
    %v683 = vmul.f32 %v617, %v676
    %v684 = vadd.f32 %v660, %v678
    %v685 = vadd.f32 %v661, %v679
    %v686 = vadd.f32 %v662, %v680
    %v687 = vadd.f32 %v663, %v681
    %v688 = vadd.f32 %v664, %v682
    %v689 = vadd.f32 %v665, %v683
    %690 = vrot.lane.b32.xlu0 %v612, 127
    %v691 = vpop.permute.xlu0 %690
    %692 = vrot.lane.b32.xlu0 %v614, 127
    %v693 = vpop.permute.xlu0 %692
    %694 = vrot.lane.b32.xlu0 %v616, 127
    %v695 = vpop.permute.xlu0 %694
    %696 = vrot.lane.b32.xlu0 %v613, 127
    %v697 = vpop.permute.xlu0 %696
    %698 = vrot.lane.b32.xlu0 %v615, 127
    %v699 = vpop.permute.xlu0 %698
    %700 = vrot.lane.b32.xlu0 %v617, 127
    %v701 = vpop.permute.xlu0 %700
    %v702 = vsel %vm428, %v691, %v697
    %v703 = vsel %vm428, %v693, %v699
    %v704 = vsel %vm428, %v695, %v701
    %v705 = vsel %vm428, %v697, %v691
    %v706 = vsel %vm428, %v699, %v693
    %v707 = vsel %vm428, %v701, %v695
    %v708 = vsel %vm437, %v702, 0.0
    %v709 = vsel %vm438, %v705, 0.0
    %v710 = vsel %vm437, %v703, 0.0
    %v711 = vsel %vm438, %v706, 0.0
    %v712 = vsel %vm437, %v704, 0.0
    %v713 = vsel %vm438, %v707, 0.0
    %714 = vset.pattern.permute.xlu0 8
    %715 = vperm.xlu0 %714, %v47
    %v716 = vpop.permute.xlu0 %715
    %718 = vset.pattern.permute.xlu0 8
    %719 = vperm.xlu0 %718, %v48
    %v720 = vpop.permute.xlu0 %719
    %722 = vset.pattern.permute.xlu0 8
    %723 = vperm.xlu0 %722, %v49
    %v724 = vpop.permute.xlu0 %723
    %v726 = vmul.f32 %v708, %v716
    %v727 = vmul.f32 %v709, %v716
    %v728 = vmul.f32 %v710, %v720
    %v729 = vmul.f32 %v711, %v720
    %v730 = vmul.f32 %v712, %v724
    %v731 = vmul.f32 %v713, %v724
    %v732 = vadd.f32 %v684, %v726
    %v733 = vadd.f32 %v685, %v727
    %v734 = vadd.f32 %v686, %v728
    %v735 = vadd.f32 %v687, %v729
    %v736 = vadd.f32 %v688, %v730
    %v737 = vadd.f32 %v689, %v731
    %739 = vset.pattern.permute.xlu0 0
    %740 = vperm.xlu0 %739, %v50
    %v741 = vpop.permute.xlu0 %740
    %744 = vset.pattern.permute.xlu0 0
    %745 = vperm.xlu0 %744, %v51
    %v746 = vpop.permute.xlu0 %745
    %749 = vset.pattern.permute.xlu0 0
    %750 = vperm.xlu0 %749, %v52
    %v751 = vpop.permute.xlu0 %750
    %v753 = vadd.f32 %v732, %v741
    %v754 = vadd.f32 %v733, %v741
    %v755 = vadd.f32 %v734, %v746
    %v756 = vadd.f32 %v735, %v746
    %v757 = vadd.f32 %v736, %v751
    %v758 = vadd.f32 %v737, %v751
    %v759 = vxor.u32 %v753, 2147483648
    %v760 = vxor.u32 %v754, 2147483648
    %v761 = vxor.u32 %v755, 2147483648
    %v762 = vxor.u32 %v756, 2147483648
    %v763 = vxor.u32 %v757, 2147483648
    %v764 = vxor.u32 %v758, 2147483648
    %v765 = vmul.f32 %v759, 1.442695
    %v766 = vpow.pop %v765
    %v767 = vmul.f32 %v760, 1.442695
    %v768 = vpow.pop %v767
    %v769 = vmul.f32 %v761, 1.442695
    %v770 = vpow.pop %v769
    %v771 = vmul.f32 %v762, 1.442695
    %v772 = vpow.pop %v771
    %v773 = vmul.f32 %v763, 1.442695
    %v774 = vpow.pop %v773
    %v775 = vmul.f32 %v764, 1.442695
    %v776 = vpow.pop %v775
    %v777 = vadd.f32 %v766, 1.0
    %v778 = vadd.f32 %v768, 1.0
    %v779 = vadd.f32 %v770, 1.0
    %v780 = vadd.f32 %v772, 1.0
    %v781 = vadd.f32 %v774, 1.0
    %v782 = vadd.f32 %v776, 1.0
    %v783 = vrcp.pop %v777
    %v784 = vmul.f32 %v777, %v783
    %v785 = vsub.f32 1.0, %v784
    %v786 = vmul.f32 %v783, %v785
    %v787 = vadd.f32 %v783, %v786
    %vm788 = vweird.f32 %v777
    %vm789 = vweird.f32 %v783
    %vm790 = vmor %vm788, %vm789
    %v791 = vsel %vm790, %v783, %v787
    %v792 = vand.u32 2147483647, %v777
    %vm793 = vcmp.eq.f32.partialorder %v792, 8.507059e+37
    %v794 = vand.u32 %v777, 2147483648
    %v795 = vor.u32 1.1754944e-38, %v794
    %v796 = vsel %vm793, %v795, %v791
    %v797 = vmul.f32 1.0, %v796
    %v798 = vrcp.pop %v778
    %v799 = vmul.f32 %v778, %v798
    %v800 = vsub.f32 1.0, %v799
    %v801 = vmul.f32 %v798, %v800
    %v802 = vadd.f32 %v798, %v801
    %vm803 = vweird.f32 %v778
    %vm804 = vweird.f32 %v798
    %vm805 = vmor %vm803, %vm804
    %v806 = vsel %vm805, %v798, %v802
    %v807 = vand.u32 2147483647, %v778
    %vm808 = vcmp.eq.f32.partialorder %v807, 8.507059e+37
    %v809 = vand.u32 %v778, 2147483648
    %v810 = vor.u32 1.1754944e-38, %v809
    %v811 = vsel %vm808, %v810, %v806
    %v812 = vmul.f32 1.0, %v811
    %v813 = vrcp.pop %v779
    %v814 = vmul.f32 %v779, %v813
    %v815 = vsub.f32 1.0, %v814
    %v816 = vmul.f32 %v813, %v815
    %v817 = vadd.f32 %v813, %v816
    %vm818 = vweird.f32 %v779
    %vm819 = vweird.f32 %v813
    %vm820 = vmor %vm818, %vm819
    %v821 = vsel %vm820, %v813, %v817
    %v822 = vand.u32 2147483647, %v779
    %vm823 = vcmp.eq.f32.partialorder %v822, 8.507059e+37
    %v824 = vand.u32 %v779, 2147483648
    %v825 = vor.u32 1.1754944e-38, %v824
    %v826 = vsel %vm823, %v825, %v821
    %v827 = vmul.f32 1.0, %v826
    %v828 = vrcp.pop %v780
    %v829 = vmul.f32 %v780, %v828
    %v830 = vsub.f32 1.0, %v829
    %v831 = vmul.f32 %v828, %v830
    %v832 = vadd.f32 %v828, %v831
    %vm833 = vweird.f32 %v780
    %vm834 = vweird.f32 %v828
    %vm835 = vmor %vm833, %vm834
    %v836 = vsel %vm835, %v828, %v832
    %v837 = vand.u32 2147483647, %v780
    %vm838 = vcmp.eq.f32.partialorder %v837, 8.507059e+37
    %v839 = vand.u32 %v780, 2147483648
    %v840 = vor.u32 1.1754944e-38, %v839
    %v841 = vsel %vm838, %v840, %v836
    %v842 = vmul.f32 1.0, %v841
    %v843 = vrcp.pop %v781
    %v844 = vmul.f32 %v781, %v843
    %v845 = vsub.f32 1.0, %v844
    %v846 = vmul.f32 %v843, %v845
    %v847 = vadd.f32 %v843, %v846
    %vm848 = vweird.f32 %v781
    %vm849 = vweird.f32 %v843
    %vm850 = vmor %vm848, %vm849
    %v851 = vsel %vm850, %v843, %v847
    %v852 = vand.u32 2147483647, %v781
    %vm853 = vcmp.eq.f32.partialorder %v852, 8.507059e+37
    %v854 = vand.u32 %v781, 2147483648
    %v855 = vor.u32 1.1754944e-38, %v854
    %v856 = vsel %vm853, %v855, %v851
    %v857 = vmul.f32 1.0, %v856
    %v858 = vrcp.pop %v782
    %v859 = vmul.f32 %v782, %v858
    %v860 = vsub.f32 1.0, %v859
    %v861 = vmul.f32 %v858, %v860
    %v862 = vadd.f32 %v858, %v861
    %vm863 = vweird.f32 %v782
    %vm864 = vweird.f32 %v858
    %vm865 = vmor %vm863, %vm864
    %v866 = vsel %vm865, %v858, %v862
    %v867 = vand.u32 2147483647, %v782
    %vm868 = vcmp.eq.f32.partialorder %v867, 8.507059e+37
    %v869 = vand.u32 %v782, 2147483648
    %v870 = vor.u32 1.1754944e-38, %v869
    %v871 = vsel %vm868, %v870, %v866
    %v872 = vmul.f32 1.0, %v871
    %v873 = vmul.f32 %v753, %v797
    %v874 = vmul.f32 %v754, %v812
    %v875 = vmul.f32 %v755, %v827
    %v876 = vmul.f32 %v756, %v842
    %v877 = vmul.f32 %v757, %v857
    %v878 = vmul.f32 %v758, %v872
    %v879 = vadd.f32 %v873, %v874
    %880 = vadd.xlane.f32.xlu0 %v879
    %v881 = vpop.xlane.xlu0 %880
    %v882 = vadd.f32 %v875, %v876
    %883 = vadd.xlane.f32.xlu0 %v882
    %v884 = vpop.xlane.xlu0 %883
    %v885 = vadd.f32 %v877, %v878
    %886 = vadd.xlane.f32.xlu0 %v885
    %v887 = vpop.xlane.xlu0 %886
    %v888 = vrcp.pop 256.0
    %v889 = vmul.f32 256.0, %v888
    %v890 = vsub.f32 1.0, %v889
    %v891 = vmul.f32 %v888, %v890
    %v892 = vadd.f32 %v888, %v891
    %vm893 = vweird.f32 %v888
    %v894 = vsel %vm893, %v888, %v892
    %v895 = vmul.f32 %v881, %v894
    %v896 = vmul.f32 %v884, %v894
    %v897 = vmul.f32 %v887, %v894
    %v898 = vmul.f32 %v895, %v53
    %v899 = vmul.f32 %v896, %v54
    %v900 = vmul.f32 %v897, %v55
    %vm901 = vcmask 7168
    %v902 = vsel %vm901, %v898, 0.0
    %v903 = vsel %vm901, %v899, 0.0
    %v904 = vadd.f32 %v902, %v903
    %v905 = vsel %vm901, %v900, 0.0
    %v906 = vadd.f32 %v904, %v905
    %v907 = vrot.slane %v906, 4
    %v908 = vadd.f32 %v906, %v907
    %v909 = vrot.slane %v908, 2
    %v910 = vadd.f32 %v908, %v909
    %v911 = vrot.slane %v910, 1
    %v912 = vadd.f32 %v910, %v911
    %v913 = vadd.f32 %v912, %v56
    %v914 = vxor.u32 %v913, 2147483648
    %v915 = vmul.f32 %v914, 1.442695
    %v916 = vpow.pop %v915
    %v917 = vadd.f32 %v916, 1.0
    %v918 = vrcp.pop %v917
    %v919 = vmul.f32 %v917, %v918
    %v920 = vsub.f32 1.0, %v919
    %v921 = vmul.f32 %v918, %v920
    %v922 = vadd.f32 %v918, %v921
    %vm923 = vweird.f32 %v917
    %vm924 = vweird.f32 %v918
    %vm925 = vmor %vm923, %vm924
    %v926 = vsel %vm925, %v918, %v922
    %v927 = vand.u32 2147483647, %v917
    %vm928 = vcmp.eq.f32.partialorder %v927, 8.507059e+37
    %v929 = vand.u32 %v917, 2147483648
    %v930 = vor.u32 1.1754944e-38, %v929
    %v931 = vsel %vm928, %v930, %v926
    %v932 = vmul.f32 1.0, %v931
    %v933 = vmul.f32 %v913, %v932
    %v934 = vperm.slane %v933, 0
    %v935 = vmul.f32 %v57, %v934
    %v936 = vmul.f32 %v58, %v934
    %v937 = vmul.f32 %v59, %v934
    %v938 = vadd.f32 %v935, 0.0
    %v939 = vadd.f32 %v936, 0.0
    %v940 = vadd.f32 %v937, 0.0
    %v941 = vadd.f32 %v938, %v60
    %v942 = vadd.f32 %v939, %v61
    %v943 = vadd.f32 %v940, %v62
    %v944 = vxor.u32 %v941, 2147483648
    %v945 = vxor.u32 %v942, 2147483648
    %v946 = vxor.u32 %v943, 2147483648
    %v947 = vmul.f32 %v944, 1.442695
    %v948 = vpow.pop %v947
    %v949 = vmul.f32 %v945, 1.442695
    %v950 = vpow.pop %v949
    %v951 = vmul.f32 %v946, 1.442695
    %v952 = vpow.pop %v951
    %v953 = vadd.f32 %v948, 1.0
    %v954 = vadd.f32 %v950, 1.0
    %v955 = vadd.f32 %v952, 1.0
    %v956 = vrcp.pop %v953
    %v957 = vmul.f32 %v953, %v956
    %v958 = vsub.f32 1.0, %v957
    %v959 = vmul.f32 %v956, %v958
    %v960 = vadd.f32 %v956, %v959
    %vm961 = vweird.f32 %v953
    %vm962 = vweird.f32 %v956
    %vm963 = vmor %vm961, %vm962
    %v964 = vsel %vm963, %v956, %v960
    %v965 = vand.u32 2147483647, %v953
    %vm966 = vcmp.eq.f32.partialorder %v965, 8.507059e+37
    %v967 = vand.u32 %v953, 2147483648
    %v968 = vor.u32 1.1754944e-38, %v967
    %v969 = vsel %vm966, %v968, %v964
    %v970 = vmul.f32 1.0, %v969
    %v971 = vrcp.pop %v954
    %v972 = vmul.f32 %v954, %v971
    %v973 = vsub.f32 1.0, %v972
    %v974 = vmul.f32 %v971, %v973
    %v975 = vadd.f32 %v971, %v974
    %vm976 = vweird.f32 %v954
    %vm977 = vweird.f32 %v971
    %vm978 = vmor %vm976, %vm977
    %v979 = vsel %vm978, %v971, %v975
    %v980 = vand.u32 2147483647, %v954
    %vm981 = vcmp.eq.f32.partialorder %v980, 8.507059e+37
    %v982 = vand.u32 %v954, 2147483648
    %v983 = vor.u32 1.1754944e-38, %v982
    %v984 = vsel %vm981, %v983, %v979
    %v985 = vmul.f32 1.0, %v984
    %v986 = vrcp.pop %v955
    %v987 = vmul.f32 %v955, %v986
    %v988 = vsub.f32 1.0, %v987
    %v989 = vmul.f32 %v986, %v988
    %v990 = vadd.f32 %v986, %v989
    %vm991 = vweird.f32 %v955
    %vm992 = vweird.f32 %v986
    %vm993 = vmor %vm991, %vm992
    %v994 = vsel %vm993, %v986, %v990
    %v995 = vand.u32 2147483647, %v955
    %vm996 = vcmp.eq.f32.partialorder %v995, 8.507059e+37
    %v997 = vand.u32 %v955, 2147483648
    %v998 = vor.u32 1.1754944e-38, %v997
    %v999 = vsel %vm996, %v998, %v994
    %v1000 = vmul.f32 1.0, %v999
    %1002 = vset.pattern.permute.xlu0 0
    %1003 = vperm.xlu0 %1002, %v970
    %v1004 = vpop.permute.xlu0 %1003
    %1007 = vset.pattern.permute.xlu0 0
    %1008 = vperm.xlu0 %1007, %v985
    %v1009 = vpop.permute.xlu0 %1008
    %1012 = vset.pattern.permute.xlu0 0
    %1013 = vperm.xlu0 %1012, %v1000
    %v1014 = vpop.permute.xlu0 %1013
    %v1016 = vmul.f32 %v873, %v1004
    %v1017 = vmul.f32 %v874, %v1004
    %v1018 = vmul.f32 %v875, %v1009
    %v1019 = vmul.f32 %v876, %v1009
    %v1020 = vmul.f32 %v877, %v1014
    %v1021 = vmul.f32 %v878, %v1014
    %1023 = vset.pattern.permute.xlu0 0
    %1024 = vperm.xlu0 %1023, %v64
    %v1025 = vpop.permute.xlu0 %1024
    %vm1027 = vcmask 195584
    %v1029 = vsel %vm1027, %v63, 0
    %1031 = vmatpush.msra.mxu0 0.0
    %1032 = vmatpush.msra.mxu0 0.0
    %1033 = vmatpush.msra.mxu0 0.0
    %1034 = vmatpush.msra.mxu0 0.0
    %1035 = vmatpush.msra.mxu0 0.0
    %1036 = vmatpush.msra.mxu0 0.0
    %1037 = vmatpush.msra.mxu0 0.0
    %1038 = vmatpush.msra.mxu0 0.0
    %1039 = vmatpush.msra.mxu0 0.0
    %1040 = vmatpush.msra.mxu0 0.0
    %1041 = vmatpush.msra.mxu0 0.0
    %1042 = vmatpush.msra.mxu0 0.0
    %1043 = vmatpush.msra.mxu0 0.0
    %1044 = vmatpush.msra.mxu0 %v1020
    %1045 = vmatpush.msra.mxu0 %v1018
    %1046 = vmatpush.msra.mxu0 %v1016
    %1047 = vmatmul.f32.gmra.mxu0 %v1029
    %v1048 = vpop.f32.mrf.mxu0
    %v1049 = vadd.f32 %v1025, %v1048
    %1050 = vdwg.mxu0
    %1051 = vmatpush.msra.mxu0 0.0
    %1052 = vmatpush.msra.mxu0 0.0
    %1053 = vmatpush.msra.mxu0 0.0
    %1054 = vmatpush.msra.mxu0 0.0
    %1055 = vmatpush.msra.mxu0 0.0
    %1056 = vmatpush.msra.mxu0 0.0
    %1057 = vmatpush.msra.mxu0 0.0
    %1058 = vmatpush.msra.mxu0 0.0
    %1059 = vmatpush.msra.mxu0 0.0
    %1060 = vmatpush.msra.mxu0 0.0
    %1061 = vmatpush.msra.mxu0 0.0
    %1062 = vmatpush.msra.mxu0 0.0
    %1063 = vmatpush.msra.mxu0 0.0
    %1064 = vmatpush.msra.mxu0 %v1021
    %1065 = vmatpush.msra.mxu0 %v1019
    %1066 = vmatpush.msra.mxu0 %v1017
    %1067 = vmatmul.f32.gmra.mxu0 %v1029
    %v1068 = vpop.f32.mrf.mxu0
    %v1069 = vadd.f32 %v1025, %v1068
    %1070 = vdwg.mxu0
    %1071 = vst [vmem:[#allocation1] ss:$2 sm:$0xff] %v100
    %v1072 = vld.sshfl [vmem:[#allocation1] sm:$0xff pattern:$0x75316420]
    %v1073 = vld.sshfl [vmem:[#allocation1 + $0x8] sm:$0xff pattern:$0x75316420]
    %v1076 = vadd.f32 %v1049, %v1072
    %v1077 = vadd.f32 %v1069, %v1073
    %v1080 = vrot.slane %v1077, 4
    %v1081 = vsel %vm130, %v1076, %v1080
    %1083 = vst [vmem:[#allocation3] sm:$0xff] %v1081
    %s1084 = scalar_lea.vmem %s0, 8
    %v1085 = vld [vmem:[%s1084] sm:$0xff]
    %1087 = vst [vmem:[#allocation1] ss:$2 sm:$0xff] %v1085
    %v1088 = vld.sshfl [vmem:[#allocation1] sm:$0xff pattern:$0x75316420]
    %v1089 = vld.sshfl [vmem:[#allocation1 + $0x8] sm:$0xff pattern:$0x75316420]
    %v1090 = vsel %vm130, %v1088, 0
    %v1092 = vsel %vm130, %v1089, 0
    %1094 = vmatpush.msra.mxu0 0.0
    %1095 = vmatpush.msra.mxu0 0.0
    %1096 = vmatpush.msra.mxu0 0.0
    %1097 = vmatpush.msra.mxu0 0.0
    %1098 = vmatpush.msra.mxu0 0.0
    %1099 = vmatpush.msra.mxu0 0.0
    %1100 = vmatpush.msra.mxu0 0.0
    %1101 = vmatpush.msra.mxu0 0.0
    %1102 = vmatpush.msra.mxu0 0.0
    %1103 = vmatpush.msra.mxu0 0.0
    %1104 = vmatpush.msra.mxu0 0.0
    %1105 = vmatpush.msra.mxu0 0.0
    %1106 = vmatpush.msra.mxu0 0.0
    %1107 = vmatpush.msra.mxu0 0.0
    %1108 = vmatpush.msra.mxu0 0.0
    %1109 = vmatpush.msra.mxu0 %v1090
    %1110 = vmatmul.f32.gmra.mxu0 %v122
    %v1111 = vpop.f32.mrf.mxu0
    %v1112 = vadd.f32 %v104, %v1111
    %1113 = vmatmul.f32.gmra.mxu0 %v125
    %v1114 = vpop.f32.mrf.mxu0
    %v1115 = vadd.f32 %v109, %v1114
    %1116 = vmatmul.f32.gmra.mxu0 %v128
    %v1117 = vpop.f32.mrf.mxu0
    %v1118 = vadd.f32 %v114, %v1117
    %1119 = vdwg.mxu0
    %1120 = vmatpush.msra.mxu0 0.0
    %1121 = vmatpush.msra.mxu0 0.0
    %1122 = vmatpush.msra.mxu0 0.0
    %1123 = vmatpush.msra.mxu0 0.0
    %1124 = vmatpush.msra.mxu0 0.0
    %1125 = vmatpush.msra.mxu0 0.0
    %1126 = vmatpush.msra.mxu0 0.0
    %1127 = vmatpush.msra.mxu0 0.0
    %1128 = vmatpush.msra.mxu0 0.0
    %1129 = vmatpush.msra.mxu0 0.0
    %1130 = vmatpush.msra.mxu0 0.0
    %1131 = vmatpush.msra.mxu0 0.0
    %1132 = vmatpush.msra.mxu0 0.0
    %1133 = vmatpush.msra.mxu0 0.0
    %1134 = vmatpush.msra.mxu0 0.0
    %1135 = vmatpush.msra.mxu0 %v1092
    %1136 = vmatmul.f32.gmra.mxu0 %v122
    %v1137 = vpop.f32.mrf.mxu0
    %v1138 = vadd.f32 %v104, %v1137
    %1139 = vmatmul.f32.gmra.mxu0 %v125
    %v1140 = vpop.f32.mrf.mxu0
    %v1141 = vadd.f32 %v109, %v1140
    %1142 = vmatmul.f32.gmra.mxu0 %v128
    %v1143 = vpop.f32.mrf.mxu0
    %v1144 = vadd.f32 %v114, %v1143
    %1145 = vdwg.mxu0
    %v1146 = vxor.u32 %v1112, 2147483648
    %v1147 = vxor.u32 %v1138, 2147483648
    %v1148 = vxor.u32 %v1115, 2147483648
    %v1149 = vxor.u32 %v1141, 2147483648
    %v1150 = vxor.u32 %v1118, 2147483648
    %v1151 = vxor.u32 %v1144, 2147483648
    %v1152 = vmul.f32 %v1146, 1.442695
    %v1153 = vpow.pop %v1152
    %v1154 = vmul.f32 %v1147, 1.442695
    %v1155 = vpow.pop %v1154
    %v1156 = vmul.f32 %v1148, 1.442695
    %v1157 = vpow.pop %v1156
    %v1158 = vmul.f32 %v1149, 1.442695
    %v1159 = vpow.pop %v1158
    %v1160 = vmul.f32 %v1150, 1.442695
    %v1161 = vpow.pop %v1160
    %v1162 = vmul.f32 %v1151, 1.442695
    %v1163 = vpow.pop %v1162
    %v1164 = vadd.f32 %v1153, 1.0
    %v1165 = vadd.f32 %v1155, 1.0
    %v1166 = vadd.f32 %v1157, 1.0
    %v1167 = vadd.f32 %v1159, 1.0
    %v1168 = vadd.f32 %v1161, 1.0
    %v1169 = vadd.f32 %v1163, 1.0
    %v1170 = vrcp.pop %v1164
    %v1171 = vmul.f32 %v1164, %v1170
    %v1172 = vsub.f32 1.0, %v1171
    %v1173 = vmul.f32 %v1170, %v1172
    %v1174 = vadd.f32 %v1170, %v1173
    %vm1175 = vweird.f32 %v1164
    %vm1176 = vweird.f32 %v1170
    %vm1177 = vmor %vm1175, %vm1176
    %v1178 = vsel %vm1177, %v1170, %v1174
    %v1179 = vand.u32 2147483647, %v1164
    %vm1180 = vcmp.eq.f32.partialorder %v1179, 8.507059e+37
    %v1181 = vand.u32 %v1164, 2147483648
    %v1182 = vor.u32 1.1754944e-38, %v1181
    %v1183 = vsel %vm1180, %v1182, %v1178
    %v1184 = vmul.f32 1.0, %v1183
    %v1185 = vrcp.pop %v1165
    %v1186 = vmul.f32 %v1165, %v1185
    %v1187 = vsub.f32 1.0, %v1186
    %v1188 = vmul.f32 %v1185, %v1187
    %v1189 = vadd.f32 %v1185, %v1188
    %vm1190 = vweird.f32 %v1165
    %vm1191 = vweird.f32 %v1185
    %vm1192 = vmor %vm1190, %vm1191
    %v1193 = vsel %vm1192, %v1185, %v1189
    %v1194 = vand.u32 2147483647, %v1165
    %vm1195 = vcmp.eq.f32.partialorder %v1194, 8.507059e+37
    %v1196 = vand.u32 %v1165, 2147483648
    %v1197 = vor.u32 1.1754944e-38, %v1196
    %v1198 = vsel %vm1195, %v1197, %v1193
    %v1199 = vmul.f32 1.0, %v1198
    %v1200 = vrcp.pop %v1166
    %v1201 = vmul.f32 %v1166, %v1200
    %v1202 = vsub.f32 1.0, %v1201
    %v1203 = vmul.f32 %v1200, %v1202
    %v1204 = vadd.f32 %v1200, %v1203
    %vm1205 = vweird.f32 %v1166
    %vm1206 = vweird.f32 %v1200
    %vm1207 = vmor %vm1205, %vm1206
    %v1208 = vsel %vm1207, %v1200, %v1204
    %v1209 = vand.u32 2147483647, %v1166
    %vm1210 = vcmp.eq.f32.partialorder %v1209, 8.507059e+37
    %v1211 = vand.u32 %v1166, 2147483648
    %v1212 = vor.u32 1.1754944e-38, %v1211
    %v1213 = vsel %vm1210, %v1212, %v1208
    %v1214 = vmul.f32 1.0, %v1213
    %v1215 = vrcp.pop %v1167
    %v1216 = vmul.f32 %v1167, %v1215
    %v1217 = vsub.f32 1.0, %v1216
    %v1218 = vmul.f32 %v1215, %v1217
    %v1219 = vadd.f32 %v1215, %v1218
    %vm1220 = vweird.f32 %v1167
    %vm1221 = vweird.f32 %v1215
    %vm1222 = vmor %vm1220, %vm1221
    %v1223 = vsel %vm1222, %v1215, %v1219
    %v1224 = vand.u32 2147483647, %v1167
    %vm1225 = vcmp.eq.f32.partialorder %v1224, 8.507059e+37
    %v1226 = vand.u32 %v1167, 2147483648
    %v1227 = vor.u32 1.1754944e-38, %v1226
    %v1228 = vsel %vm1225, %v1227, %v1223
    %v1229 = vmul.f32 1.0, %v1228
    %v1230 = vrcp.pop %v1168
    %v1231 = vmul.f32 %v1168, %v1230
    %v1232 = vsub.f32 1.0, %v1231
    %v1233 = vmul.f32 %v1230, %v1232
    %v1234 = vadd.f32 %v1230, %v1233
    %vm1235 = vweird.f32 %v1168
    %vm1236 = vweird.f32 %v1230
    %vm1237 = vmor %vm1235, %vm1236
    %v1238 = vsel %vm1237, %v1230, %v1234
    %v1239 = vand.u32 2147483647, %v1168
    %vm1240 = vcmp.eq.f32.partialorder %v1239, 8.507059e+37
    %v1241 = vand.u32 %v1168, 2147483648
    %v1242 = vor.u32 1.1754944e-38, %v1241
    %v1243 = vsel %vm1240, %v1242, %v1238
    %v1244 = vmul.f32 1.0, %v1243
    %v1245 = vrcp.pop %v1169
    %v1246 = vmul.f32 %v1169, %v1245
    %v1247 = vsub.f32 1.0, %v1246
    %v1248 = vmul.f32 %v1245, %v1247
    %v1249 = vadd.f32 %v1245, %v1248
    %vm1250 = vweird.f32 %v1169
    %vm1251 = vweird.f32 %v1245
    %vm1252 = vmor %vm1250, %vm1251
    %v1253 = vsel %vm1252, %v1245, %v1249
    %v1254 = vand.u32 2147483647, %v1169
    %vm1255 = vcmp.eq.f32.partialorder %v1254, 8.507059e+37
    %v1256 = vand.u32 %v1169, 2147483648
    %v1257 = vor.u32 1.1754944e-38, %v1256
    %v1258 = vsel %vm1255, %v1257, %v1253
    %v1259 = vmul.f32 1.0, %v1258
    %v1260 = vmul.f32 %v1112, %v1184
    %v1261 = vmul.f32 %v1138, %v1199
    %v1262 = vmul.f32 %v1115, %v1214
    %v1263 = vmul.f32 %v1141, %v1229
    %v1264 = vmul.f32 %v1118, %v1244
    %v1265 = vmul.f32 %v1144, %v1259
    %1266 = vrot.lane.b32.xlu0 %v1260, 16
    %v1267 = vpop.permute.xlu0 %1266
    %1268 = vrot.lane.b32.xlu0 %v1262, 16
    %v1269 = vpop.permute.xlu0 %1268
    %1270 = vrot.lane.b32.xlu0 %v1264, 16
    %v1271 = vpop.permute.xlu0 %1270
    %1272 = vrot.lane.b32.xlu0 %v1261, 16
    %v1273 = vpop.permute.xlu0 %1272
    %1274 = vrot.lane.b32.xlu0 %v1263, 16
    %v1275 = vpop.permute.xlu0 %1274
    %1276 = vrot.lane.b32.xlu0 %v1265, 16
    %v1277 = vpop.permute.xlu0 %1276
    %v1278 = vsel %vm319, %v1267, %v1273
    %v1279 = vsel %vm319, %v1269, %v1275
    %v1280 = vsel %vm319, %v1271, %v1277
    %v1281 = vsel %vm319, %v1273, %v1267
    %v1282 = vsel %vm319, %v1275, %v1269
    %v1283 = vsel %vm319, %v1277, %v1271
    %v1284 = vsel %vm328, %v1281, 0.0
    %v1285 = vsel %vm329, %v1278, 0.0
    %v1286 = vsel %vm328, %v1282, 0.0
    %v1287 = vsel %vm329, %v1279, 0.0
    %v1288 = vsel %vm328, %v1283, 0.0
    %v1289 = vsel %vm329, %v1280, 0.0
    %1290 = vrot.lane.b32.xlu0 %v1284, 1
    %v1291 = vpop.permute.xlu0 %1290
    %1292 = vrot.lane.b32.xlu0 %v1286, 1
    %v1293 = vpop.permute.xlu0 %1292
    %1294 = vrot.lane.b32.xlu0 %v1288, 1
    %v1295 = vpop.permute.xlu0 %1294
    %1296 = vrot.lane.b32.xlu0 %v1285, 1
    %v1297 = vpop.permute.xlu0 %1296
    %1298 = vrot.lane.b32.xlu0 %v1287, 1
    %v1299 = vpop.permute.xlu0 %1298
    %1300 = vrot.lane.b32.xlu0 %v1289, 1
    %v1301 = vpop.permute.xlu0 %1300
    %v1302 = vsel %vm348, %v1291, %v1297
    %v1303 = vsel %vm348, %v1293, %v1299
    %v1304 = vsel %vm348, %v1295, %v1301
    %v1305 = vsel %vm348, %v1297, %v1291
    %v1306 = vsel %vm348, %v1299, %v1293
    %v1307 = vsel %vm348, %v1301, %v1295
    %v1308 = vsel %vm357, %v1305, 0.0
    %v1309 = vsel %vm358, %v1302, 0.0
    %v1310 = vsel %vm357, %v1306, 0.0
    %v1311 = vsel %vm358, %v1303, 0.0
    %v1312 = vsel %vm357, %v1307, 0.0
    %v1313 = vsel %vm358, %v1304, 0.0
    %v1314 = vmul.f32 %v1308, %v368
    %v1315 = vmul.f32 %v1309, %v368
    %v1316 = vmul.f32 %v1310, %v373
    %v1317 = vmul.f32 %v1311, %v373
    %v1318 = vmul.f32 %v1312, %v378
    %v1319 = vmul.f32 %v1313, %v378
    %v1320 = vadd.f32 %v1314, 0.0
    %v1321 = vadd.f32 %v1315, 0.0
    %v1322 = vadd.f32 %v1316, 0.0
    %v1323 = vadd.f32 %v1317, 0.0
    %v1324 = vadd.f32 %v1318, 0.0
    %v1325 = vadd.f32 %v1319, 0.0
    %v1326 = vmul.f32 %v1284, %v394
    %v1327 = vmul.f32 %v1285, %v394
    %v1328 = vmul.f32 %v1286, %v398
    %v1329 = vmul.f32 %v1287, %v398
    %v1330 = vmul.f32 %v1288, %v402
    %v1331 = vmul.f32 %v1289, %v402
    %v1332 = vadd.f32 %v1320, %v1326
    %v1333 = vadd.f32 %v1321, %v1327
    %v1334 = vadd.f32 %v1322, %v1328
    %v1335 = vadd.f32 %v1323, %v1329
    %v1336 = vadd.f32 %v1324, %v1330
    %v1337 = vadd.f32 %v1325, %v1331
    %1338 = vrot.lane.b32.xlu0 %v1284, 127
    %v1339 = vpop.permute.xlu0 %1338
    %1340 = vrot.lane.b32.xlu0 %v1286, 127
    %v1341 = vpop.permute.xlu0 %1340
    %1342 = vrot.lane.b32.xlu0 %v1288, 127
    %v1343 = vpop.permute.xlu0 %1342
    %1344 = vrot.lane.b32.xlu0 %v1285, 127
    %v1345 = vpop.permute.xlu0 %1344
    %1346 = vrot.lane.b32.xlu0 %v1287, 127
    %v1347 = vpop.permute.xlu0 %1346
    %1348 = vrot.lane.b32.xlu0 %v1289, 127
    %v1349 = vpop.permute.xlu0 %1348
    %v1350 = vsel %vm428, %v1339, %v1345
    %v1351 = vsel %vm428, %v1341, %v1347
    %v1352 = vsel %vm428, %v1343, %v1349
    %v1353 = vsel %vm428, %v1345, %v1339
    %v1354 = vsel %vm428, %v1347, %v1341
    %v1355 = vsel %vm428, %v1349, %v1343
    %v1356 = vsel %vm437, %v1350, 0.0
    %v1357 = vsel %vm438, %v1353, 0.0
    %v1358 = vsel %vm437, %v1351, 0.0
    %v1359 = vsel %vm438, %v1354, 0.0
    %v1360 = vsel %vm437, %v1352, 0.0
    %v1361 = vsel %vm438, %v1355, 0.0
    %v1362 = vmul.f32 %v1356, %v447
    %v1363 = vmul.f32 %v1357, %v447
    %v1364 = vmul.f32 %v1358, %v451
    %v1365 = vmul.f32 %v1359, %v451
    %v1366 = vmul.f32 %v1360, %v455
    %v1367 = vmul.f32 %v1361, %v455
    %v1368 = vadd.f32 %v1332, %v1362
    %v1369 = vadd.f32 %v1333, %v1363
    %v1370 = vadd.f32 %v1334, %v1364
    %v1371 = vadd.f32 %v1335, %v1365
    %v1372 = vadd.f32 %v1336, %v1366
    %v1373 = vadd.f32 %v1337, %v1367
    %1374 = vrot.lane.b32.xlu0 %v1260, 1
    %v1375 = vpop.permute.xlu0 %1374
    %1376 = vrot.lane.b32.xlu0 %v1262, 1
    %v1377 = vpop.permute.xlu0 %1376
    %1378 = vrot.lane.b32.xlu0 %v1264, 1
    %v1379 = vpop.permute.xlu0 %1378
    %1380 = vrot.lane.b32.xlu0 %v1261, 1
    %v1381 = vpop.permute.xlu0 %1380
    %1382 = vrot.lane.b32.xlu0 %v1263, 1
    %v1383 = vpop.permute.xlu0 %1382
    %1384 = vrot.lane.b32.xlu0 %v1265, 1
    %v1385 = vpop.permute.xlu0 %1384
    %v1386 = vsel %vm348, %v1375, %v1381
    %v1387 = vsel %vm348, %v1377, %v1383
    %v1388 = vsel %vm348, %v1379, %v1385
    %v1389 = vsel %vm348, %v1381, %v1375
    %v1390 = vsel %vm348, %v1383, %v1377
    %v1391 = vsel %vm348, %v1385, %v1379
    %v1392 = vsel %vm357, %v1389, 0.0
    %v1393 = vsel %vm358, %v1386, 0.0
    %v1394 = vsel %vm357, %v1390, 0.0
    %v1395 = vsel %vm358, %v1387, 0.0
    %v1396 = vsel %vm357, %v1391, 0.0
    %v1397 = vsel %vm358, %v1388, 0.0
    %v1398 = vmul.f32 %v1392, %v495
    %v1399 = vmul.f32 %v1393, %v495
    %v1400 = vmul.f32 %v1394, %v499
    %v1401 = vmul.f32 %v1395, %v499
    %v1402 = vmul.f32 %v1396, %v503
    %v1403 = vmul.f32 %v1397, %v503
    %v1404 = vadd.f32 %v1368, %v1398
    %v1405 = vadd.f32 %v1369, %v1399
    %v1406 = vadd.f32 %v1370, %v1400
    %v1407 = vadd.f32 %v1371, %v1401
    %v1408 = vadd.f32 %v1372, %v1402
    %v1409 = vadd.f32 %v1373, %v1403
    %v1410 = vmul.f32 %v1260, %v519
    %v1411 = vmul.f32 %v1261, %v519
    %v1412 = vmul.f32 %v1262, %v523
    %v1413 = vmul.f32 %v1263, %v523
    %v1414 = vmul.f32 %v1264, %v527
    %v1415 = vmul.f32 %v1265, %v527
    %v1416 = vadd.f32 %v1404, %v1410
    %v1417 = vadd.f32 %v1405, %v1411
    %v1418 = vadd.f32 %v1406, %v1412
    %v1419 = vadd.f32 %v1407, %v1413
    %v1420 = vadd.f32 %v1408, %v1414
    %v1421 = vadd.f32 %v1409, %v1415
    %1422 = vrot.lane.b32.xlu0 %v1260, 127
    %v1423 = vpop.permute.xlu0 %1422
    %1424 = vrot.lane.b32.xlu0 %v1262, 127
    %v1425 = vpop.permute.xlu0 %1424
    %1426 = vrot.lane.b32.xlu0 %v1264, 127
    %v1427 = vpop.permute.xlu0 %1426
    %1428 = vrot.lane.b32.xlu0 %v1261, 127
    %v1429 = vpop.permute.xlu0 %1428
    %1430 = vrot.lane.b32.xlu0 %v1263, 127
    %v1431 = vpop.permute.xlu0 %1430
    %1432 = vrot.lane.b32.xlu0 %v1265, 127
    %v1433 = vpop.permute.xlu0 %1432
    %v1434 = vsel %vm428, %v1423, %v1429
    %v1435 = vsel %vm428, %v1425, %v1431
    %v1436 = vsel %vm428, %v1427, %v1433
    %v1437 = vsel %vm428, %v1429, %v1423
    %v1438 = vsel %vm428, %v1431, %v1425
    %v1439 = vsel %vm428, %v1433, %v1427
    %v1440 = vsel %vm437, %v1434, 0.0
    %v1441 = vsel %vm438, %v1437, 0.0
    %v1442 = vsel %vm437, %v1435, 0.0
    %v1443 = vsel %vm438, %v1438, 0.0
    %v1444 = vsel %vm437, %v1436, 0.0
    %v1445 = vsel %vm438, %v1439, 0.0
    %v1446 = vmul.f32 %v1440, %v567
    %v1447 = vmul.f32 %v1441, %v567
    %v1448 = vmul.f32 %v1442, %v571
    %v1449 = vmul.f32 %v1443, %v571
    %v1450 = vmul.f32 %v1444, %v575
    %v1451 = vmul.f32 %v1445, %v575
    %v1452 = vadd.f32 %v1416, %v1446
    %v1453 = vadd.f32 %v1417, %v1447
    %v1454 = vadd.f32 %v1418, %v1448
    %v1455 = vadd.f32 %v1419, %v1449
    %v1456 = vadd.f32 %v1420, %v1450
    %v1457 = vadd.f32 %v1421, %v1451
    %1458 = vrot.lane.b32.xlu0 %v1260, 112
    %v1459 = vpop.permute.xlu0 %1458
    %1460 = vrot.lane.b32.xlu0 %v1262, 112
    %v1461 = vpop.permute.xlu0 %1460
    %1462 = vrot.lane.b32.xlu0 %v1264, 112
    %v1463 = vpop.permute.xlu0 %1462
    %1464 = vrot.lane.b32.xlu0 %v1261, 112
    %v1465 = vpop.permute.xlu0 %1464
    %1466 = vrot.lane.b32.xlu0 %v1263, 112
    %v1467 = vpop.permute.xlu0 %1466
    %1468 = vrot.lane.b32.xlu0 %v1265, 112
    %v1469 = vpop.permute.xlu0 %1468
    %v1470 = vsel %vm601, %v1459, %v1465
    %v1471 = vsel %vm601, %v1461, %v1467
    %v1472 = vsel %vm601, %v1463, %v1469
    %v1473 = vsel %vm601, %v1465, %v1459
    %v1474 = vsel %vm601, %v1467, %v1461
    %v1475 = vsel %vm601, %v1469, %v1463
    %v1476 = vsel %vm610, %v1470, 0.0
    %v1477 = vsel %vm611, %v1473, 0.0
    %v1478 = vsel %vm610, %v1471, 0.0
    %v1479 = vsel %vm611, %v1474, 0.0
    %v1480 = vsel %vm610, %v1472, 0.0
    %v1481 = vsel %vm611, %v1475, 0.0
    %1482 = vrot.lane.b32.xlu0 %v1476, 1
    %v1483 = vpop.permute.xlu0 %1482
    %1484 = vrot.lane.b32.xlu0 %v1478, 1
    %v1485 = vpop.permute.xlu0 %1484
    %1486 = vrot.lane.b32.xlu0 %v1480, 1
    %v1487 = vpop.permute.xlu0 %1486
    %1488 = vrot.lane.b32.xlu0 %v1477, 1
    %v1489 = vpop.permute.xlu0 %1488
    %1490 = vrot.lane.b32.xlu0 %v1479, 1
    %v1491 = vpop.permute.xlu0 %1490
    %1492 = vrot.lane.b32.xlu0 %v1481, 1
    %v1493 = vpop.permute.xlu0 %1492
    %v1494 = vsel %vm348, %v1483, %v1489
    %v1495 = vsel %vm348, %v1485, %v1491
    %v1496 = vsel %vm348, %v1487, %v1493
    %v1497 = vsel %vm348, %v1489, %v1483
    %v1498 = vsel %vm348, %v1491, %v1485
    %v1499 = vsel %vm348, %v1493, %v1487
    %v1500 = vsel %vm357, %v1497, 0.0
    %v1501 = vsel %vm358, %v1494, 0.0
    %v1502 = vsel %vm357, %v1498, 0.0
    %v1503 = vsel %vm358, %v1495, 0.0
    %v1504 = vsel %vm357, %v1499, 0.0
    %v1505 = vsel %vm358, %v1496, 0.0
    %v1506 = vmul.f32 %v1500, %v644
    %v1507 = vmul.f32 %v1501, %v644
    %v1508 = vmul.f32 %v1502, %v648
    %v1509 = vmul.f32 %v1503, %v648
    %v1510 = vmul.f32 %v1504, %v652
    %v1511 = vmul.f32 %v1505, %v652
    %v1512 = vadd.f32 %v1452, %v1506
    %v1513 = vadd.f32 %v1453, %v1507
    %v1514 = vadd.f32 %v1454, %v1508
    %v1515 = vadd.f32 %v1455, %v1509
    %v1516 = vadd.f32 %v1456, %v1510
    %v1517 = vadd.f32 %v1457, %v1511
    %v1518 = vmul.f32 %v1476, %v668
    %v1519 = vmul.f32 %v1477, %v668
    %v1520 = vmul.f32 %v1478, %v672
    %v1521 = vmul.f32 %v1479, %v672
    %v1522 = vmul.f32 %v1480, %v676
    %v1523 = vmul.f32 %v1481, %v676
    %v1524 = vadd.f32 %v1512, %v1518
    %v1525 = vadd.f32 %v1513, %v1519
    %v1526 = vadd.f32 %v1514, %v1520
    %v1527 = vadd.f32 %v1515, %v1521
    %v1528 = vadd.f32 %v1516, %v1522
    %v1529 = vadd.f32 %v1517, %v1523
    %1530 = vrot.lane.b32.xlu0 %v1476, 127
    %v1531 = vpop.permute.xlu0 %1530
    %1532 = vrot.lane.b32.xlu0 %v1478, 127
    %v1533 = vpop.permute.xlu0 %1532
    %1534 = vrot.lane.b32.xlu0 %v1480, 127
    %v1535 = vpop.permute.xlu0 %1534
    %1536 = vrot.lane.b32.xlu0 %v1477, 127
    %v1537 = vpop.permute.xlu0 %1536
    %1538 = vrot.lane.b32.xlu0 %v1479, 127
    %v1539 = vpop.permute.xlu0 %1538
    %1540 = vrot.lane.b32.xlu0 %v1481, 127
    %v1541 = vpop.permute.xlu0 %1540
    %v1542 = vsel %vm428, %v1531, %v1537
    %v1543 = vsel %vm428, %v1533, %v1539
    %v1544 = vsel %vm428, %v1535, %v1541
    %v1545 = vsel %vm428, %v1537, %v1531
    %v1546 = vsel %vm428, %v1539, %v1533
    %v1547 = vsel %vm428, %v1541, %v1535
    %v1548 = vsel %vm437, %v1542, 0.0
    %v1549 = vsel %vm438, %v1545, 0.0
    %v1550 = vsel %vm437, %v1543, 0.0
    %v1551 = vsel %vm438, %v1546, 0.0
    %v1552 = vsel %vm437, %v1544, 0.0
    %v1553 = vsel %vm438, %v1547, 0.0
    %v1554 = vmul.f32 %v1548, %v716
    %v1555 = vmul.f32 %v1549, %v716
    %v1556 = vmul.f32 %v1550, %v720
    %v1557 = vmul.f32 %v1551, %v720
    %v1558 = vmul.f32 %v1552, %v724
    %v1559 = vmul.f32 %v1553, %v724
    %v1560 = vadd.f32 %v1524, %v1554
    %v1561 = vadd.f32 %v1525, %v1555
    %v1562 = vadd.f32 %v1526, %v1556
    %v1563 = vadd.f32 %v1527, %v1557
    %v1564 = vadd.f32 %v1528, %v1558
    %v1565 = vadd.f32 %v1529, %v1559
    %v1566 = vadd.f32 %v1560, %v741
    %v1567 = vadd.f32 %v1561, %v741
    %v1568 = vadd.f32 %v1562, %v746
    %v1569 = vadd.f32 %v1563, %v746
    %v1570 = vadd.f32 %v1564, %v751
    %v1571 = vadd.f32 %v1565, %v751
    %v1572 = vxor.u32 %v1566, 2147483648
    %v1573 = vxor.u32 %v1567, 2147483648
    %v1574 = vxor.u32 %v1568, 2147483648
    %v1575 = vxor.u32 %v1569, 2147483648
    %v1576 = vxor.u32 %v1570, 2147483648
    %v1577 = vxor.u32 %v1571, 2147483648
    %v1578 = vmul.f32 %v1572, 1.442695
    %v1579 = vpow.pop %v1578
    %v1580 = vmul.f32 %v1573, 1.442695
    %v1581 = vpow.pop %v1580
    %v1582 = vmul.f32 %v1574, 1.442695
    %v1583 = vpow.pop %v1582
    %v1584 = vmul.f32 %v1575, 1.442695
    %v1585 = vpow.pop %v1584
    %v1586 = vmul.f32 %v1576, 1.442695
    %v1587 = vpow.pop %v1586
    %v1588 = vmul.f32 %v1577, 1.442695
    %v1589 = vpow.pop %v1588
    %v1590 = vadd.f32 %v1579, 1.0
    %v1591 = vadd.f32 %v1581, 1.0
    %v1592 = vadd.f32 %v1583, 1.0
    %v1593 = vadd.f32 %v1585, 1.0
    %v1594 = vadd.f32 %v1587, 1.0
    %v1595 = vadd.f32 %v1589, 1.0
    %v1596 = vrcp.pop %v1590
    %v1597 = vmul.f32 %v1590, %v1596
    %v1598 = vsub.f32 1.0, %v1597
    %v1599 = vmul.f32 %v1596, %v1598
    %v1600 = vadd.f32 %v1596, %v1599
    %vm1601 = vweird.f32 %v1590
    %vm1602 = vweird.f32 %v1596
    %vm1603 = vmor %vm1601, %vm1602
    %v1604 = vsel %vm1603, %v1596, %v1600
    %v1605 = vand.u32 2147483647, %v1590
    %vm1606 = vcmp.eq.f32.partialorder %v1605, 8.507059e+37
    %v1607 = vand.u32 %v1590, 2147483648
    %v1608 = vor.u32 1.1754944e-38, %v1607
    %v1609 = vsel %vm1606, %v1608, %v1604
    %v1610 = vmul.f32 1.0, %v1609
    %v1611 = vrcp.pop %v1591
    %v1612 = vmul.f32 %v1591, %v1611
    %v1613 = vsub.f32 1.0, %v1612
    %v1614 = vmul.f32 %v1611, %v1613
    %v1615 = vadd.f32 %v1611, %v1614
    %vm1616 = vweird.f32 %v1591
    %vm1617 = vweird.f32 %v1611
    %vm1618 = vmor %vm1616, %vm1617
    %v1619 = vsel %vm1618, %v1611, %v1615
    %v1620 = vand.u32 2147483647, %v1591
    %vm1621 = vcmp.eq.f32.partialorder %v1620, 8.507059e+37
    %v1622 = vand.u32 %v1591, 2147483648
    %v1623 = vor.u32 1.1754944e-38, %v1622
    %v1624 = vsel %vm1621, %v1623, %v1619
    %v1625 = vmul.f32 1.0, %v1624
    %v1626 = vrcp.pop %v1592
    %v1627 = vmul.f32 %v1592, %v1626
    %v1628 = vsub.f32 1.0, %v1627
    %v1629 = vmul.f32 %v1626, %v1628
    %v1630 = vadd.f32 %v1626, %v1629
    %vm1631 = vweird.f32 %v1592
    %vm1632 = vweird.f32 %v1626
    %vm1633 = vmor %vm1631, %vm1632
    %v1634 = vsel %vm1633, %v1626, %v1630
    %v1635 = vand.u32 2147483647, %v1592
    %vm1636 = vcmp.eq.f32.partialorder %v1635, 8.507059e+37
    %v1637 = vand.u32 %v1592, 2147483648
    %v1638 = vor.u32 1.1754944e-38, %v1637
    %v1639 = vsel %vm1636, %v1638, %v1634
    %v1640 = vmul.f32 1.0, %v1639
    %v1641 = vrcp.pop %v1593
    %v1642 = vmul.f32 %v1593, %v1641
    %v1643 = vsub.f32 1.0, %v1642
    %v1644 = vmul.f32 %v1641, %v1643
    %v1645 = vadd.f32 %v1641, %v1644
    %vm1646 = vweird.f32 %v1593
    %vm1647 = vweird.f32 %v1641
    %vm1648 = vmor %vm1646, %vm1647
    %v1649 = vsel %vm1648, %v1641, %v1645
    %v1650 = vand.u32 2147483647, %v1593
    %vm1651 = vcmp.eq.f32.partialorder %v1650, 8.507059e+37
    %v1652 = vand.u32 %v1593, 2147483648
    %v1653 = vor.u32 1.1754944e-38, %v1652
    %v1654 = vsel %vm1651, %v1653, %v1649
    %v1655 = vmul.f32 1.0, %v1654
    %v1656 = vrcp.pop %v1594
    %v1657 = vmul.f32 %v1594, %v1656
    %v1658 = vsub.f32 1.0, %v1657
    %v1659 = vmul.f32 %v1656, %v1658
    %v1660 = vadd.f32 %v1656, %v1659
    %vm1661 = vweird.f32 %v1594
    %vm1662 = vweird.f32 %v1656
    %vm1663 = vmor %vm1661, %vm1662
    %v1664 = vsel %vm1663, %v1656, %v1660
    %v1665 = vand.u32 2147483647, %v1594
    %vm1666 = vcmp.eq.f32.partialorder %v1665, 8.507059e+37
    %v1667 = vand.u32 %v1594, 2147483648
    %v1668 = vor.u32 1.1754944e-38, %v1667
    %v1669 = vsel %vm1666, %v1668, %v1664
    %v1670 = vmul.f32 1.0, %v1669
    %v1671 = vrcp.pop %v1595
    %v1672 = vmul.f32 %v1595, %v1671
    %v1673 = vsub.f32 1.0, %v1672
    %v1674 = vmul.f32 %v1671, %v1673
    %v1675 = vadd.f32 %v1671, %v1674
    %vm1676 = vweird.f32 %v1595
    %vm1677 = vweird.f32 %v1671
    %vm1678 = vmor %vm1676, %vm1677
    %v1679 = vsel %vm1678, %v1671, %v1675
    %v1680 = vand.u32 2147483647, %v1595
    %vm1681 = vcmp.eq.f32.partialorder %v1680, 8.507059e+37
    %v1682 = vand.u32 %v1595, 2147483648
    %v1683 = vor.u32 1.1754944e-38, %v1682
    %v1684 = vsel %vm1681, %v1683, %v1679
    %v1685 = vmul.f32 1.0, %v1684
    %v1686 = vmul.f32 %v1566, %v1610
    %v1687 = vmul.f32 %v1567, %v1625
    %v1688 = vmul.f32 %v1568, %v1640
    %v1689 = vmul.f32 %v1569, %v1655
    %v1690 = vmul.f32 %v1570, %v1670
    %v1691 = vmul.f32 %v1571, %v1685
    %v1692 = vadd.f32 %v1686, %v1687
    %1693 = vadd.xlane.f32.xlu0 %v1692
    %v1694 = vpop.xlane.xlu0 %1693
    %v1695 = vadd.f32 %v1688, %v1689
    %1696 = vadd.xlane.f32.xlu0 %v1695
    %v1697 = vpop.xlane.xlu0 %1696
    %v1698 = vadd.f32 %v1690, %v1691
    %1699 = vadd.xlane.f32.xlu0 %v1698
    %v1700 = vpop.xlane.xlu0 %1699
    %v1701 = vmul.f32 %v1694, %v894
    %v1702 = vmul.f32 %v1697, %v894
    %v1703 = vmul.f32 %v1700, %v894
    %v1704 = vmul.f32 %v1701, %v53
    %v1705 = vmul.f32 %v1702, %v54
    %v1706 = vmul.f32 %v1703, %v55
    %v1707 = vsel %vm901, %v1704, 0.0
    %v1708 = vsel %vm901, %v1705, 0.0
    %v1709 = vadd.f32 %v1707, %v1708
    %v1710 = vsel %vm901, %v1706, 0.0
    %v1711 = vadd.f32 %v1709, %v1710
    %v1712 = vrot.slane %v1711, 4
    %v1713 = vadd.f32 %v1711, %v1712
    %v1714 = vrot.slane %v1713, 2
    %v1715 = vadd.f32 %v1713, %v1714
    %v1716 = vrot.slane %v1715, 1
    %v1717 = vadd.f32 %v1715, %v1716
    %v1718 = vadd.f32 %v1717, %v56
    %v1719 = vxor.u32 %v1718, 2147483648
    %v1720 = vmul.f32 %v1719, 1.442695
    %v1721 = vpow.pop %v1720
    %v1722 = vadd.f32 %v1721, 1.0
    %v1723 = vrcp.pop %v1722
    %v1724 = vmul.f32 %v1722, %v1723
    %v1725 = vsub.f32 1.0, %v1724
    %v1726 = vmul.f32 %v1723, %v1725
    %v1727 = vadd.f32 %v1723, %v1726
    %vm1728 = vweird.f32 %v1722
    %vm1729 = vweird.f32 %v1723
    %vm1730 = vmor %vm1728, %vm1729
    %v1731 = vsel %vm1730, %v1723, %v1727
    %v1732 = vand.u32 2147483647, %v1722
    %vm1733 = vcmp.eq.f32.partialorder %v1732, 8.507059e+37
    %v1734 = vand.u32 %v1722, 2147483648
    %v1735 = vor.u32 1.1754944e-38, %v1734
    %v1736 = vsel %vm1733, %v1735, %v1731
    %v1737 = vmul.f32 1.0, %v1736
    %v1738 = vmul.f32 %v1718, %v1737
    %v1739 = vperm.slane %v1738, 0
    %v1740 = vmul.f32 %v57, %v1739
    %v1741 = vmul.f32 %v58, %v1739
    %v1742 = vmul.f32 %v59, %v1739
    %v1743 = vadd.f32 %v1740, 0.0
    %v1744 = vadd.f32 %v1741, 0.0
    %v1745 = vadd.f32 %v1742, 0.0
    %v1746 = vadd.f32 %v1743, %v60
    %v1747 = vadd.f32 %v1744, %v61
    %v1748 = vadd.f32 %v1745, %v62
    %v1749 = vxor.u32 %v1746, 2147483648
    %v1750 = vxor.u32 %v1747, 2147483648
    %v1751 = vxor.u32 %v1748, 2147483648
    %v1752 = vmul.f32 %v1749, 1.442695
    %v1753 = vpow.pop %v1752
    %v1754 = vmul.f32 %v1750, 1.442695
    %v1755 = vpow.pop %v1754
    %v1756 = vmul.f32 %v1751, 1.442695
    %v1757 = vpow.pop %v1756
    %v1758 = vadd.f32 %v1753, 1.0
    %v1759 = vadd.f32 %v1755, 1.0
    %v1760 = vadd.f32 %v1757, 1.0
    %v1761 = vrcp.pop %v1758
    %v1762 = vmul.f32 %v1758, %v1761
    %v1763 = vsub.f32 1.0, %v1762
    %v1764 = vmul.f32 %v1761, %v1763
    %v1765 = vadd.f32 %v1761, %v1764
    %vm1766 = vweird.f32 %v1758
    %vm1767 = vweird.f32 %v1761
    %vm1768 = vmor %vm1766, %vm1767
    %v1769 = vsel %vm1768, %v1761, %v1765
    %v1770 = vand.u32 2147483647, %v1758
    %vm1771 = vcmp.eq.f32.partialorder %v1770, 8.507059e+37
    %v1772 = vand.u32 %v1758, 2147483648
    %v1773 = vor.u32 1.1754944e-38, %v1772
    %v1774 = vsel %vm1771, %v1773, %v1769
    %v1775 = vmul.f32 1.0, %v1774
    %v1776 = vrcp.pop %v1759
    %v1777 = vmul.f32 %v1759, %v1776
    %v1778 = vsub.f32 1.0, %v1777
    %v1779 = vmul.f32 %v1776, %v1778
    %v1780 = vadd.f32 %v1776, %v1779
    %vm1781 = vweird.f32 %v1759
    %vm1782 = vweird.f32 %v1776
    %vm1783 = vmor %vm1781, %vm1782
    %v1784 = vsel %vm1783, %v1776, %v1780
    %v1785 = vand.u32 2147483647, %v1759
    %vm1786 = vcmp.eq.f32.partialorder %v1785, 8.507059e+37
    %v1787 = vand.u32 %v1759, 2147483648
    %v1788 = vor.u32 1.1754944e-38, %v1787
    %v1789 = vsel %vm1786, %v1788, %v1784
    %v1790 = vmul.f32 1.0, %v1789
    %v1791 = vrcp.pop %v1760
    %v1792 = vmul.f32 %v1760, %v1791
    %v1793 = vsub.f32 1.0, %v1792
    %v1794 = vmul.f32 %v1791, %v1793
    %v1795 = vadd.f32 %v1791, %v1794
    %vm1796 = vweird.f32 %v1760
    %vm1797 = vweird.f32 %v1791
    %vm1798 = vmor %vm1796, %vm1797
    %v1799 = vsel %vm1798, %v1791, %v1795
    %v1800 = vand.u32 2147483647, %v1760
    %vm1801 = vcmp.eq.f32.partialorder %v1800, 8.507059e+37
    %v1802 = vand.u32 %v1760, 2147483648
    %v1803 = vor.u32 1.1754944e-38, %v1802
    %v1804 = vsel %vm1801, %v1803, %v1799
    %v1805 = vmul.f32 1.0, %v1804
    %1807 = vset.pattern.permute.xlu0 0
    %1808 = vperm.xlu0 %1807, %v1775
    %v1809 = vpop.permute.xlu0 %1808
    %1812 = vset.pattern.permute.xlu0 0
    %1813 = vperm.xlu0 %1812, %v1790
    %v1814 = vpop.permute.xlu0 %1813
    %1817 = vset.pattern.permute.xlu0 0
    %1818 = vperm.xlu0 %1817, %v1805
    %v1819 = vpop.permute.xlu0 %1818
    %v1821 = vmul.f32 %v1686, %v1809
    %v1822 = vmul.f32 %v1687, %v1809
    %v1823 = vmul.f32 %v1688, %v1814
    %v1824 = vmul.f32 %v1689, %v1814
    %v1825 = vmul.f32 %v1690, %v1819
    %v1826 = vmul.f32 %v1691, %v1819
    %1827 = vmatpush.msra.mxu0 0.0
    %1828 = vmatpush.msra.mxu0 0.0
    %1829 = vmatpush.msra.mxu0 0.0
    %1830 = vmatpush.msra.mxu0 0.0
    %1831 = vmatpush.msra.mxu0 0.0
    %1832 = vmatpush.msra.mxu0 0.0
    %1833 = vmatpush.msra.mxu0 0.0
    %1834 = vmatpush.msra.mxu0 0.0
    %1835 = vmatpush.msra.mxu0 0.0
    %1836 = vmatpush.msra.mxu0 0.0
    %1837 = vmatpush.msra.mxu0 0.0
    %1838 = vmatpush.msra.mxu0 0.0
    %1839 = vmatpush.msra.mxu0 0.0
    %1840 = vmatpush.msra.mxu0 %v1825
    %1841 = vmatpush.msra.mxu0 %v1823
    %1842 = vmatpush.msra.mxu0 %v1821
    %1843 = vmatmul.f32.gmra.mxu0 %v1029
    %v1844 = vpop.f32.mrf.mxu0
    %v1845 = vadd.f32 %v1025, %v1844
    %1846 = vdwg.mxu0
    %1847 = vmatpush.msra.mxu0 0.0
    %1848 = vmatpush.msra.mxu0 0.0
    %1849 = vmatpush.msra.mxu0 0.0
    %1850 = vmatpush.msra.mxu0 0.0
    %1851 = vmatpush.msra.mxu0 0.0
    %1852 = vmatpush.msra.mxu0 0.0
    %1853 = vmatpush.msra.mxu0 0.0
    %1854 = vmatpush.msra.mxu0 0.0
    %1855 = vmatpush.msra.mxu0 0.0
    %1856 = vmatpush.msra.mxu0 0.0
    %1857 = vmatpush.msra.mxu0 0.0
    %1858 = vmatpush.msra.mxu0 0.0
    %1859 = vmatpush.msra.mxu0 0.0
    %1860 = vmatpush.msra.mxu0 %v1826
    %1861 = vmatpush.msra.mxu0 %v1824
    %1862 = vmatpush.msra.mxu0 %v1822
    %1863 = vmatmul.f32.gmra.mxu0 %v1029
    %v1864 = vpop.f32.mrf.mxu0
    %v1865 = vadd.f32 %v1025, %v1864
    %1866 = vdwg.mxu0
    %1867 = vst [vmem:[#allocation1] ss:$2 sm:$0xff] %v1085
    %v1868 = vld.sshfl [vmem:[#allocation1] sm:$0xff pattern:$0x75316420]
    %v1869 = vld.sshfl [vmem:[#allocation1 + $0x8] sm:$0xff pattern:$0x75316420]
    %v1872 = vadd.f32 %v1845, %v1868
    %v1873 = vadd.f32 %v1865, %v1869
    %v1876 = vrot.slane %v1873, 4
    %v1877 = vsel %vm130, %v1872, %v1876
    %s1879 = scalar_lea.vmem [#allocation3], 8
    %1880 = vst [vmem:[%s1879] sm:$0xff] %v1877
    // Predicated region
    $region46: #{tpu_custom_call.1} parent=1 // pred_check
      _
    $region47: #{tpu_custom_call.1} parent=1 // pred_check_branch
      %1882 = sbr.rel (0) target = $region49
    $region48: #{tpu_custom_call.1} parent=1 // pred_region
      %1884 = vsyncadd [#allocation4], 0
      %s1885 = sshll.u32 [#allocation3], 4
      %s1886 = int_to_ptr.vmem [resolvable:$true] %s1885
      %s1887 = sshll.u32 %s11, 4
      %s1888 = int_to_ptr.hbm [resolvable:$true] %s1887
      %1893 = dma.vmem_to_hbm [thread:$0]  %s1886, 256, %s1888, [#allocation4], 128, 128, 8
    $region49: #{tpu_custom_call.1} parent=1 // pred_fallthru
      _
    // Predicated region
    $region50: #{tpu_custom_call.1} parent=1 // pred_check
      _
    $region51: #{tpu_custom_call.1} parent=1 // pred_check_branch
      %1895 = sbr.rel (0) target = $region53
    $region52: #{tpu_custom_call.1} parent=1 // pred_region
      %1897 = dma.done [#allocation4], 256
    $region53: #{tpu_custom_call.1} parent=1 // pred_fallthru
      _
    %1898 = vsyncpa [#allocation4], 1

</llo_original>
